<compile_context>
chip_gen: v7x
topology: tpu7x:2x2x1
jax: 0.10.0
libtpu: 0.0.40
codegen_flags: <defaults>
</compile_context>

<pallas_src>
import jax
import jax.numpy as jnp
from jax.experimental import pallas as pl
from jax.experimental.pallas import tpu as pltpu


def _round_up(x, m):
    return ((x + m - 1) // m) * m


def soft_q_mlp_kernel(x_ref, w1_ref, b1_ref, w2_ref, b2_ref, w3_ref, b3_ref,
                      o_ref):
    # Cast x to bf16 in-kernel (VPU cast hides under the tile DMA).
    x = x_ref[...].astype(jnp.bfloat16)
    # fc1 + ReLU  (bf16 operands, f32 accumulate / epilogue)
    h1 = jnp.dot(x, w1_ref[...], preferred_element_type=jnp.float32)
    h1 = jnp.maximum(h1 + b1_ref[...], 0.0)
    # fc2 + ReLU
    h2 = jnp.dot(h1.astype(jnp.bfloat16), w2_ref[...],
                 preferred_element_type=jnp.float32)
    h2 = jnp.maximum(h2 + b2_ref[...], 0.0)
    # fc3 (no activation) -> lane-dense padded Q-values
    q = jnp.dot(h2.astype(jnp.bfloat16), w3_ref[...],
                preferred_element_type=jnp.float32)
    o_ref[...] = (q + b3_ref[...]).astype(o_ref.dtype)


def prepare_params(params):
    """One-time (per parameter update) prep, hoisted out of the forward path:
    cast matmul weights to bf16 and pad only fc3's output dim to 128 so the
    kernel's output store is lane-dense.  Hidden (=64) stays unpadded."""
    w1, b1, w2, b2, w3, b3 = params
    n_actions = w3.shape[1]
    n_pad = _round_up(n_actions, 128)
    w3p = jnp.pad(w3, ((0, 0), (0, n_pad - n_actions)))
    b3p = jnp.pad(b3.reshape(1, -1), ((0, 0), (0, n_pad - n_actions)))
    return (w1.astype(jnp.bfloat16), b1.reshape(1, -1).astype(jnp.float32),
            w2.astype(jnp.bfloat16), b2.reshape(1, -1).astype(jnp.float32),
            w3p.astype(jnp.bfloat16), b3p.astype(jnp.float32))


def soft_q_forward(x_nchw, prepared, n_actions, *, tb_max=512):
    """x_nchw: [B, C, H, W] float32; prepared = prepare_params(params).
    Returns Q-values [B, n_actions] (float32)."""
    w1, b1, w2, b2, w3p, b3p = prepared
    B = x_nchw.shape[0]
    n_in = w1.shape[0]
    H = w1.shape[1]
    N_pad = w3p.shape[1]

    # Row-major flatten per sample (== torch.flatten(x).reshape(-1, n_in)).
    x2d = x_nchw.reshape(B, n_in)

    # Batch tiling — no zero-pad pass over x.  The partial last block (if any)
    # reads garbage rows that are computed but masked on the output store.
    if B <= 32:
        tb = B  # single full-array tile (tiny inference batch)
    else:
        # >= 2 tiles so a v7x megacore's second TensorCore gets work;
        # 16-row multiple for clean sublane packing; capped at tb_max.
        tb = max(16, min(tb_max, _round_up(-(-B // 2), 16)))
    grid = (pl.cdiv(B, tb),)

    flops = 2 * B * (n_in * H + H * H + H * N_pad)
    bytes_accessed = (B * n_in * 4                                   # x (f32)
                      + (n_in * H + H * H + H * N_pad) * 2           # weights (bf16)
                      + (2 * H + N_pad) * 4                          # biases (f32)
                      + B * N_pad * 4)                               # out (f32)

    def run(use_buffered):
        def const_spec(shape):
            # Constant index_map -> fetched once, stays VMEM-resident.
            kwargs = {"pipeline_mode": pl.Buffered(1)} if use_buffered else {}
            return pl.BlockSpec(shape, lambda i: (0, 0), **kwargs)

        return pl.pallas_call(
            soft_q_mlp_kernel,
            out_shape=jax.ShapeDtypeStruct((B, N_pad), jnp.float32),
            grid_spec=pltpu.PrefetchScalarGridSpec(
                num_scalar_prefetch=0,
                grid=grid,
                in_specs=[
                    pl.BlockSpec((tb, n_in), lambda i: (i, 0)),   # x tile (f32)
                    const_spec((n_in, H)),                        # w1 (resident)
                    const_spec((1, H)),                           # b1
                    const_spec((H, H)),                           # w2
                    const_spec((1, H)),                           # b2
                    const_spec((H, N_pad)),                       # w3
                    const_spec((1, N_pad)),                       # b3
                ],
                out_specs=pl.BlockSpec((tb, N_pad), lambda i: (i, 0)),
            ),
            compiler_params=pltpu.CompilerParams(
                dimension_semantics=("parallel",),
                vmem_limit_bytes=32 * 1024 * 1024),
            cost_estimate=pl.CostEstimate(
                flops=flops, transcendentals=0, bytes_accessed=bytes_accessed),
        )(x2d, w1, b1, w2, b2, w3p, b3p)

    try:
        out = run(use_buffered=True)
    except Exception:
        # Fallback if this jax version rejects single-buffered pipeline_mode.
        out = run(use_buffered=False)

    # Slice padded columns back to the logical n_actions Q-values.
    return out[:, :n_actions]


def init_params(key, n_in, hidden, n_actions):
    """PyTorch-style uniform(-1/sqrt(fan_in), 1/sqrt(fan_in)) init.
    Weights stored transposed relative to nn.Linear: (in, out); biases (1, out)."""
    ks = jax.random.split(key, 6)

    def linear(kw, kb, fan_in, fan_out):
        bound = 1.0 / jnp.sqrt(jnp.float32(fan_in))
        w = jax.random.uniform(kw, (fan_in, fan_out), jnp.float32, -bound, bound)
        b = jax.random.uniform(kb, (1, fan_out), jnp.float32, -bound, bound)
        return w, b

    w1, b1 = linear(ks[0], ks[1], n_in, hidden)
    w2, b2 = linear(ks[2], ks[3], hidden, hidden)
    w3, b3 = linear(ks[4], ks[5], hidden, n_actions)
    return (w1, b1, w2, b2, w3, b3)


def reference_forward(x_nchw, params):
    w1, b1, w2, b2, w3, b3 = params
    B = x_nchw.shape[0]
    x = x_nchw.reshape(B, -1).astype(jnp.float32)
    h1 = jnp.maximum(x @ w1 + b1, 0.0)
    h2 = jnp.maximum(h1 @ w2 + b2, 0.0)
    return h2 @ w3 + b3


if __name__ == "__main__":
    # Shapes consistent with the module: observation_space.shape = (4, 16, 16)
    # -> n_input_channels = 4*16*16 = 1024; action_space.n = 6; hidden = 64.
    B, C, Himg, Wimg = 2, 4, 16, 16
    n_in = C * Himg * Wimg
    hidden = 64
    n_actions = 6

    key = jax.random.PRNGKey(0)
    k_x, k_p = jax.random.split(key)
    x = jax.random.normal(k_x, (B, C, Himg, Wimg), jnp.float32)
    params = init_params(k_p, n_in, hidden, n_actions)

    # One-time parameter prep (pad/cast), hoisted out of the per-call path.
    prepared = prepare_params(params)
    prepared = jax.block_until_ready(prepared)

    q = soft_q_forward(x, prepared, n_actions)
    q = jax.block_until_ready(q)

    q_ref = reference_forward(x, params)
    assert q.shape == (B, n_actions)
    # bf16 matmul operands (f32 accumulation) => relaxed tolerance vs f32 ref.
    assert jnp.allclose(q, q_ref, atol=5e-2, rtol=5e-2), "mismatch vs reference"

    # TODO(synk): getVVal / choose_action (log-sum-exp soft value, Categorical
    # sampling) are host-side inference utilities outside the forward hot path;
    # not ported to Pallas.
    print("KERNEL_OK")
</pallas_src>

<mosaic_0001>
module attributes {stable_mosaic.version = 11 : i64} {
  func.func @soft_q_mlp_kernel(%arg0: i32, %arg1: memref<2x1024xf32, #tpu.memory_space<vmem>>, %arg2: memref<1024x64xbf16, #tpu.memory_space<vmem>>, %arg3: memref<1x64xf32, #tpu.memory_space<vmem>>, %arg4: memref<64x64xbf16, #tpu.memory_space<vmem>>, %arg5: memref<1x64xf32, #tpu.memory_space<vmem>>, %arg6: memref<64x128xbf16, #tpu.memory_space<vmem>>, %arg7: memref<1x128xf32, #tpu.memory_space<vmem>>, %arg8: memref<2x128xf32, #tpu.memory_space<vmem>>) attributes {dimension_semantics = [#tpu.dimension_semantics<parallel>], iteration_bounds = array<i64: 1>, scalar_prefetch = 0 : i64, scratch_operands = 0 : i64, tpu.core_type = #tpu.core_type<tc>, window_params = [{transform_indices = @transform_0, window_bounds = array<i64: 2, 1024>}, {pipeline_mode = #tpu.pipeline_mode<synchronous>, transform_indices = @transform_1, window_bounds = array<i64: 1024, 64>}, {pipeline_mode = #tpu.pipeline_mode<synchronous>, transform_indices = @transform_2, window_bounds = array<i64: 1, 64>}, {pipeline_mode = #tpu.pipeline_mode<synchronous>, transform_indices = @transform_3, window_bounds = array<i64: 64, 64>}, {pipeline_mode = #tpu.pipeline_mode<synchronous>, transform_indices = @transform_4, window_bounds = array<i64: 1, 64>}, {pipeline_mode = #tpu.pipeline_mode<synchronous>, transform_indices = @transform_5, window_bounds = array<i64: 64, 128>}, {pipeline_mode = #tpu.pipeline_mode<synchronous>, transform_indices = @transform_6, window_bounds = array<i64: 1, 128>}, {transform_indices = @transform_7, window_bounds = array<i64: 2, 128>}]} {
    %c0 = arith.constant 0 : index
    %c0_0 = arith.constant 0 : index
    %0 = vector.load %arg1[%c0, %c0_0] : memref<2x1024xf32, #tpu.memory_space<vmem>>, vector<2x1024xf32>
    %1 = arith.truncf %0 : vector<2x1024xf32> to vector<2x1024xbf16>
    %c0_1 = arith.constant 0 : index
    %c0_2 = arith.constant 0 : index
    %2 = vector.load %arg2[%c0_1, %c0_2] : memref<1024x64xbf16, #tpu.memory_space<vmem>>, vector<1024x64xbf16>
    %cst = arith.constant dense<0.000000e+00> : vector<2x64xf32>
    %3 = tpu.matmul %1, %2, %cst {dimension_numbers = #tpu.dot_dimension_numbers<[1], [0], [0], [1], [0, 0, 1, 1], [], []>} : vector<2x1024xbf16>, vector<1024x64xbf16>, vector<2x64xf32> -> vector<2x64xf32>
    %c0_3 = arith.constant 0 : index
    %c0_4 = arith.constant 0 : index
    %4 = vector.load %arg3[%c0_3, %c0_4] : memref<1x64xf32, #tpu.memory_space<vmem>>, vector<1x64xf32>
    %5 = vector.broadcast %4 : vector<1x64xf32> to vector<2x64xf32>
    %6 = arith.addf %3, %5 : vector<2x64xf32>
    %cst_5 = arith.constant 0.000000e+00 : f32
    %7 = vector.broadcast %cst_5 : f32 to vector<2x64xf32>
    %8 = arith.maximumf %6, %7 : vector<2x64xf32>
    %9 = arith.truncf %8 : vector<2x64xf32> to vector<2x64xbf16>
    %c0_6 = arith.constant 0 : index
    %c0_7 = arith.constant 0 : index
    %10 = vector.load %arg4[%c0_6, %c0_7] : memref<64x64xbf16, #tpu.memory_space<vmem>>, vector<64x64xbf16>
    %cst_8 = arith.constant dense<0.000000e+00> : vector<2x64xf32>
    %11 = tpu.matmul %9, %10, %cst_8 {dimension_numbers = #tpu.dot_dimension_numbers<[1], [0], [0], [1], [0, 0, 1, 1], [], []>} : vector<2x64xbf16>, vector<64x64xbf16>, vector<2x64xf32> -> vector<2x64xf32>
    %c0_9 = arith.constant 0 : index
    %c0_10 = arith.constant 0 : index
    %12 = vector.load %arg5[%c0_9, %c0_10] : memref<1x64xf32, #tpu.memory_space<vmem>>, vector<1x64xf32>
    %13 = vector.broadcast %12 : vector<1x64xf32> to vector<2x64xf32>
    %14 = arith.addf %11, %13 : vector<2x64xf32>
    %cst_11 = arith.constant 0.000000e+00 : f32
    %15 = vector.broadcast %cst_11 : f32 to vector<2x64xf32>
    %16 = arith.maximumf %14, %15 : vector<2x64xf32>
    %17 = arith.truncf %16 : vector<2x64xf32> to vector<2x64xbf16>
    %c0_12 = arith.constant 0 : index
    %c0_13 = arith.constant 0 : index
    %18 = vector.load %arg6[%c0_12, %c0_13] : memref<64x128xbf16, #tpu.memory_space<vmem>>, vector<64x128xbf16>
    %cst_14 = arith.constant dense<0.000000e+00> : vector<2x128xf32>
    %19 = tpu.matmul %17, %18, %cst_14 {dimension_numbers = #tpu.dot_dimension_numbers<[1], [0], [0], [1], [0, 0, 1, 1], [], []>} : vector<2x64xbf16>, vector<64x128xbf16>, vector<2x128xf32> -> vector<2x128xf32>
    %c0_15 = arith.constant 0 : index
    %c0_16 = arith.constant 0 : index
    %20 = vector.load %arg7[%c0_15, %c0_16] : memref<1x128xf32, #tpu.memory_space<vmem>>, vector<1x128xf32>
    %21 = vector.broadcast %20 : vector<1x128xf32> to vector<2x128xf32>
    %22 = arith.addf %19, %21 : vector<2x128xf32>
    %c0_17 = arith.constant 0 : index
    %c0_18 = arith.constant 0 : index
    %23 = vector.load %arg8[%c0_17, %c0_18] : memref<2x128xf32, #tpu.memory_space<vmem>>, vector<2x128xf32>
    tpu.vector_store %arg8[%c0_17, %c0_18], %22 {strides = array<i32>} : memref<2x128xf32, #tpu.memory_space<vmem>>, vector<2x128xf32>,
    return
  }
  func.func @transform_0(%arg0: i32) -> (i32, i32) {
    %c0_i32 = arith.constant 0 : i32
    %c0_i32_0 = arith.constant 0 : i32
    return %arg0, %c0_i32 : i32, i32
  }
  func.func @transform_1(%arg0: i32) -> (i32, i32) {
    %c0_i32 = arith.constant 0 : i32
    %c0_i32_0 = arith.constant 0 : i32
    %c0_i32_1 = arith.constant 0 : i32
    return %c0_i32, %c0_i32_0 : i32, i32
  }
  func.func @transform_2(%arg0: i32) -> (i32, i32) {
    %c0_i32 = arith.constant 0 : i32
    %c0_i32_0 = arith.constant 0 : i32
    %c0_i32_1 = arith.constant 0 : i32
    return %c0_i32, %c0_i32_0 : i32, i32
  }
  func.func @transform_3(%arg0: i32) -> (i32, i32) {
    %c0_i32 = arith.constant 0 : i32
    %c0_i32_0 = arith.constant 0 : i32
    %c0_i32_1 = arith.constant 0 : i32
    return %c0_i32, %c0_i32_0 : i32, i32
  }
  func.func @transform_4(%arg0: i32) -> (i32, i32) {
    %c0_i32 = arith.constant 0 : i32
    %c0_i32_0 = arith.constant 0 : i32
    %c0_i32_1 = arith.constant 0 : i32
    return %c0_i32, %c0_i32_0 : i32, i32
  }
  func.func @transform_5(%arg0: i32) -> (i32, i32) {
    %c0_i32 = arith.constant 0 : i32
    %c0_i32_0 = arith.constant 0 : i32
    %c0_i32_1 = arith.constant 0 : i32
    return %c0_i32, %c0_i32_0 : i32, i32
  }
  func.func @transform_6(%arg0: i32) -> (i32, i32) {
    %c0_i32 = arith.constant 0 : i32
    %c0_i32_0 = arith.constant 0 : i32
    %c0_i32_1 = arith.constant 0 : i32
    return %c0_i32, %c0_i32_0 : i32, i32
  }
  func.func @transform_7(%arg0: i32) -> (i32, i32) {
    %c0_i32 = arith.constant 0 : i32
    %c0_i32_0 = arith.constant 0 : i32
    return %arg0, %c0_i32 : i32, i32
  }
}

module attributes {stable_mosaic.version = 11 : i64} {
  func.func @soft_q_mlp_kernel(%arg0: i32, %arg1: memref<2x1024xf32, #tpu.memory_space<vmem>>, %arg2: memref<1024x64xbf16, #tpu.memory_space<vmem>>, %arg3: memref<1x64xf32, #tpu.memory_space<vmem>>, %arg4: memref<64x64xbf16, #tpu.memory_space<vmem>>, %arg5: memref<1x64xf32, #tpu.memory_space<vmem>>, %arg6: memref<64x128xbf16, #tpu.memory_space<vmem>>, %arg7: memref<1x128xf32, #tpu.memory_space<vmem>>, %arg8: memref<2x128xf32, #tpu.memory_space<vmem>>) attributes {dimension_semantics = [#tpu.dimension_semantics<parallel>], iteration_bounds = array<i64: 1>, scalar_prefetch = 0 : i64, scratch_operands = 0 : i64, tpu.core_type = #tpu.core_type<tc>, window_params = [{transform_indices = @transform_0, window_bounds = array<i64: 2, 1024>}, {pipeline_mode = #tpu.pipeline_mode<synchronous>, transform_indices = @transform_1, window_bounds = array<i64: 1024, 64>}, {pipeline_mode = #tpu.pipeline_mode<synchronous>, transform_indices = @transform_2, window_bounds = array<i64: 1, 64>}, {pipeline_mode = #tpu.pipeline_mode<synchronous>, transform_indices = @transform_3, window_bounds = array<i64: 64, 64>}, {pipeline_mode = #tpu.pipeline_mode<synchronous>, transform_indices = @transform_4, window_bounds = array<i64: 1, 64>}, {pipeline_mode = #tpu.pipeline_mode<synchronous>, transform_indices = @transform_5, window_bounds = array<i64: 64, 128>}, {pipeline_mode = #tpu.pipeline_mode<synchronous>, transform_indices = @transform_6, window_bounds = array<i64: 1, 128>}, {transform_indices = @transform_7, window_bounds = array<i64: 2, 128>}]} {
    %c0 = arith.constant 0 : index
    %c0_0 = arith.constant 0 : index
    %0 = vector.load %arg1[%c0, %c0_0] : memref<2x1024xf32, #tpu.memory_space<vmem>>, vector<2x1024xf32>
    %1 = arith.truncf %0 : vector<2x1024xf32> to vector<2x1024xbf16>
    %c0_1 = arith.constant 0 : index
    %c0_2 = arith.constant 0 : index
    %2 = vector.load %arg2[%c0_1, %c0_2] : memref<1024x64xbf16, #tpu.memory_space<vmem>>, vector<1024x64xbf16>
    %cst = arith.constant dense<0.000000e+00> : vector<2x64xf32>
    %3 = tpu.matmul %1, %2, %cst {dimension_numbers = #tpu.dot_dimension_numbers<[1], [0], [0], [1], [0, 0, 1, 1], [], []>} : vector<2x1024xbf16>, vector<1024x64xbf16>, vector<2x64xf32> -> vector<2x64xf32>
    %c0_3 = arith.constant 0 : index
    %c0_4 = arith.constant 0 : index
    %4 = vector.load %arg3[%c0_3, %c0_4] : memref<1x64xf32, #tpu.memory_space<vmem>>, vector<1x64xf32>
    %5 = vector.broadcast %4 : vector<1x64xf32> to vector<2x64xf32>
    %6 = arith.addf %3, %5 : vector<2x64xf32>
    %cst_5 = arith.constant 0.000000e+00 : f32
    %7 = vector.broadcast %cst_5 : f32 to vector<2x64xf32>
    %8 = arith.maximumf %6, %7 : vector<2x64xf32>
    %9 = arith.truncf %8 : vector<2x64xf32> to vector<2x64xbf16>
    %c0_6 = arith.constant 0 : index
    %c0_7 = arith.constant 0 : index
    %10 = vector.load %arg4[%c0_6, %c0_7] : memref<64x64xbf16, #tpu.memory_space<vmem>>, vector<64x64xbf16>
    %cst_8 = arith.constant dense<0.000000e+00> : vector<2x64xf32>
    %11 = tpu.matmul %9, %10, %cst_8 {dimension_numbers = #tpu.dot_dimension_numbers<[1], [0], [0], [1], [0, 0, 1, 1], [], []>} : vector<2x64xbf16>, vector<64x64xbf16>, vector<2x64xf32> -> vector<2x64xf32>
    %c0_9 = arith.constant 0 : index
    %c0_10 = arith.constant 0 : index
    %12 = vector.load %arg5[%c0_9, %c0_10] : memref<1x64xf32, #tpu.memory_space<vmem>>, vector<1x64xf32>
    %13 = vector.broadcast %12 : vector<1x64xf32> to vector<2x64xf32>
    %14 = arith.addf %11, %13 : vector<2x64xf32>
    %cst_11 = arith.constant 0.000000e+00 : f32
    %15 = vector.broadcast %cst_11 : f32 to vector<2x64xf32>
    %16 = arith.maximumf %14, %15 : vector<2x64xf32>
    %17 = arith.truncf %16 : vector<2x64xf32> to vector<2x64xbf16>
    %c0_12 = arith.constant 0 : index
    %c0_13 = arith.constant 0 : index
    %18 = vector.load %arg6[%c0_12, %c0_13] : memref<64x128xbf16, #tpu.memory_space<vmem>>, vector<64x128xbf16>
    %cst_14 = arith.constant dense<0.000000e+00> : vector<2x128xf32>
    %19 = tpu.matmul %17, %18, %cst_14 {dimension_numbers = #tpu.dot_dimension_numbers<[1], [0], [0], [1], [0, 0, 1, 1], [], []>} : vector<2x64xbf16>, vector<64x128xbf16>, vector<2x128xf32> -> vector<2x128xf32>
    %c0_15 = arith.constant 0 : index
    %c0_16 = arith.constant 0 : index
    %20 = vector.load %arg7[%c0_15, %c0_16] : memref<1x128xf32, #tpu.memory_space<vmem>>, vector<1x128xf32>
    %21 = vector.broadcast %20 : vector<1x128xf32> to vector<2x128xf32>
    %22 = arith.addf %19, %21 : vector<2x128xf32>
    %c0_17 = arith.constant 0 : index
    %c0_18 = arith.constant 0 : index
    %23 = vector.load %arg8[%c0_17, %c0_18] : memref<2x128xf32, #tpu.memory_space<vmem>>, vector<2x128xf32>
    tpu.vector_store %arg8[%c0_17, %c0_18], %22 {strides = array<i32>} : memref<2x128xf32, #tpu.memory_space<vmem>>, vector<2x128xf32>,
    return
  }
  func.func @transform_0(%arg0: i32) -> (i32, i32) {
    %c0_i32 = arith.constant 0 : i32
    %c0_i32_0 = arith.constant 0 : i32
    return %arg0, %c0_i32 : i32, i32
  }
  func.func @transform_1(%arg0: i32) -> (i32, i32) {
    %c0_i32 = arith.constant 0 : i32
    %c0_i32_0 = arith.constant 0 : i32
    %c0_i32_1 = arith.constant 0 : i32
    return %c0_i32, %c0_i32_0 : i32, i32
  }
  func.func @transform_2(%arg0: i32) -> (i32, i32) {
    %c0_i32 = arith.constant 0 : i32
    %c0_i32_0 = arith.constant 0 : i32
    %c0_i32_1 = arith.constant 0 : i32
    return %c0_i32, %c0_i32_0 : i32, i32
  }
  func.func @transform_3(%arg0: i32) -> (i32, i32) {
    %c0_i32 = arith.constant 0 : i32
    %c0_i32_0 = arith.constant 0 : i32
    %c0_i32_1 = arith.constant 0 : i32
    return %c0_i32, %c0_i32_0 : i32, i32
  }
  func.func @transform_4(%arg0: i32) -> (i32, i32) {
    %c0_i32 = arith.constant 0 : i32
    %c0_i32_0 = arith.constant 0 : i32
    %c0_i32_1 = arith.constant 0 : i32
    return %c0_i32, %c0_i32_0 : i32, i32
  }
  func.func @transform_5(%arg0: i32) -> (i32, i32) {
    %c0_i32 = arith.constant 0 : i32
    %c0_i32_0 = arith.constant 0 : i32
    %c0_i32_1 = arith.constant 0 : i32
    return %c0_i32, %c0_i32_0 : i32, i32
  }
  func.func @transform_6(%arg0: i32) -> (i32, i32) {
    %c0_i32 = arith.constant 0 : i32
    %c0_i32_0 = arith.constant 0 : i32
    %c0_i32_1 = arith.constant 0 : i32
    return %c0_i32, %c0_i32_0 : i32, i32
  }
  func.func @transform_7(%arg0: i32) -> (i32, i32) {
    %c0_i32 = arith.constant 0 : i32
    %c0_i32_0 = arith.constant 0 : i32
    return %arg0, %c0_i32 : i32, i32
  }
}

</mosaic_0001>

<llo_original>
// kernel: tpu_custom_call.1
$region0: #{tpu_custom_call.1}
  #allocation0 [shape = 'u32[]', space=smem, size = 0x4, offset = 0x4, fixed_abs, tag = 'smem constant byte address 0x4 - core index']
  #allocation1 [shape = 'u32[144,128]{1,0:T(1,128)}', space=vmem, size = 0x12000, scoped, tag = 'internal scratch']
  %s0 = inlined_call_operand.vmem [shape: f32[2,1024], index: 0, kind: input, shape index: {}]
  %s1 = inlined_call_operand.vmem [shape: bf16[1024,64], index: 1, kind: input, shape index: {}]
  %s2 = inlined_call_operand.vmem [shape: f32[1,64], index: 2, kind: input, shape index: {}]
  %s3 = inlined_call_operand.vmem [shape: bf16[64,64], index: 3, kind: input, shape index: {}]
  %s4 = inlined_call_operand.vmem [shape: f32[1,64], index: 4, kind: input, shape index: {}]
  %s5 = inlined_call_operand.vmem [shape: bf16[64,128], index: 5, kind: input, shape index: {}]
  %s6 = inlined_call_operand.vmem [shape: f32[1,128], index: 6, kind: input, shape index: {}]
  %s7 = inlined_call_operand.hbm [shape: f32[2,128], index: 7, kind: output, shape index: {}]
  %s8 = sld [smem:[#allocation0]]
  $region38: #{tpu_custom_call.1} parent=0
    _
  %s10 = ssub.s32 1, %s8
  %s11 = scalar_select 0, %s10, %s8
  $region1: #{tpu_custom_call.1} parent=0
    #allocation2 [shape = 'u8[1024]{0}', space=vmem, size = 0x400, scoped, tag = 'output window, operand 0, single buffered']
    #allocation3 [shape = 's32[1]{0}', space=sflag, size = 0x4, scoped, tag = 'scoped memory for tpu_custom_call.1']
    %12 = vsyncpa [#allocation3], 0
    // Predicated region
    $region2: #{tpu_custom_call.1} parent=1 // pred_check
      _
    $region3: #{tpu_custom_call.1} parent=1 // pred_check_branch
      %14 = sbr.rel (0) target = $region5
    $region4: #{tpu_custom_call.1} parent=1 // pred_region
      _
    $region5: #{tpu_custom_call.1} parent=1 // pred_fallthru
      _
    // Predicated region
    $region6: #{tpu_custom_call.1} parent=1 // pred_check
      _
    $region7: #{tpu_custom_call.1} parent=1 // pred_check_branch
      %16 = sbr.rel (0) target = $region9
    $region8: #{tpu_custom_call.1} parent=1 // pred_region
      _
    $region9: #{tpu_custom_call.1} parent=1 // pred_fallthru
      _
    // Predicated region
    $region10: #{tpu_custom_call.1} parent=1 // pred_check
      _
    $region11: #{tpu_custom_call.1} parent=1 // pred_check_branch
      %18 = sbr.rel (0) target = $region13
    $region12: #{tpu_custom_call.1} parent=1 // pred_region
      _
    $region13: #{tpu_custom_call.1} parent=1 // pred_fallthru
      _
    // Predicated region
    $region14: #{tpu_custom_call.1} parent=1 // pred_check
      _
    $region15: #{tpu_custom_call.1} parent=1 // pred_check_branch
      %20 = sbr.rel (0) target = $region17
    $region16: #{tpu_custom_call.1} parent=1 // pred_region
      _
    $region17: #{tpu_custom_call.1} parent=1 // pred_fallthru
      _
    // Predicated region
    $region18: #{tpu_custom_call.1} parent=1 // pred_check
      _
    $region19: #{tpu_custom_call.1} parent=1 // pred_check_branch
      %22 = sbr.rel (0) target = $region21
    $region20: #{tpu_custom_call.1} parent=1 // pred_region
      _
    $region21: #{tpu_custom_call.1} parent=1 // pred_fallthru
      _
    // Predicated region
    $region22: #{tpu_custom_call.1} parent=1 // pred_check
      _
    $region23: #{tpu_custom_call.1} parent=1 // pred_check_branch
      %24 = sbr.rel (0) target = $region25
    $region24: #{tpu_custom_call.1} parent=1 // pred_region
      _
    $region25: #{tpu_custom_call.1} parent=1 // pred_fallthru
      _
    // Predicated region
    $region26: #{tpu_custom_call.1} parent=1 // pred_check
      _
    $region27: #{tpu_custom_call.1} parent=1 // pred_check_branch
      %26 = sbr.rel (0) target = $region29
    $region28: #{tpu_custom_call.1} parent=1 // pred_region
      _
    $region29: #{tpu_custom_call.1} parent=1 // pred_fallthru
      _
    %v28 = vld [vmem:[%s0] sm:$0xff]
    %v29 = vld [vmem:[%s0 + $0x8] sm:$0xff]
    %v32 = vcombine.high %v28, %v28
    %v34 = vunpack.c.l.s4 1983009808
    %v35 = vunpack.c.0.s8 %v34
    %v36 = vlaneseq
    %v37 = vshrl.u32 %v36, 7
    %v38 = vsub.s32 %v35, %v37
    %v39 = vrot.slane %v28, %v38
    %v41 = vunpack.c.l.s4 1983009808
    %v42 = vunpack.c.0.s8 %v41
    %v43 = vlaneseq
    %v44 = vshrl.u32 %v43, 7
    %v45 = vsub.s32 %v42, %v44
    %v46 = vrot.slane %v32, %v45
    %v47 = vcombine.high %v39, %v39
    %v48 = vcombine.high %v46, %v46
    %v49 = vcombine.high %v29, %v29
    %v51 = vunpack.c.l.s4 1983009808
    %v52 = vunpack.c.0.s8 %v51
    %v53 = vlaneseq
    %v54 = vshrl.u32 %v53, 7
    %v55 = vsub.s32 %v52, %v54
    %v56 = vrot.slane %v29, %v55
    %v58 = vunpack.c.l.s4 1983009808
    %v59 = vunpack.c.0.s8 %v58
    %v60 = vlaneseq
    %v61 = vshrl.u32 %v60, 7
    %v62 = vsub.s32 %v59, %v61
    %v63 = vrot.slane %v49, %v62
    %v64 = vcombine.high %v56, %v56
    %v65 = vcombine.high %v63, %v63
    %v74 = vpack.c.bf16 %v39, %v39
    %v75 = vpack.c.bf16 %v47, %v47
    %v76 = vpack.c.bf16 %v46, %v46
    %v77 = vpack.c.bf16 %v48, %v48
    %v78 = vpack.c.bf16 %v56, %v56
    %v79 = vpack.c.bf16 %v64, %v64
    %v80 = vpack.c.bf16 %v63, %v63
    %v81 = vpack.c.bf16 %v65, %v65
    %v82 = vld [vmem:[%s1] sm:$0xf]
    %v83 = vld [vmem:[%s1 + $0x4] sm:$0xf]
    %v84 = vld [vmem:[%s1 + $0x8] sm:$0xf]
    %v85 = vld [vmem:[%s1 + $0xc] sm:$0xf]
    %v86 = vld [vmem:[%s1 + $0x10] sm:$0xf]
    %v87 = vld [vmem:[%s1 + $0x14] sm:$0xf]
    %v88 = vld [vmem:[%s1 + $0x18] sm:$0xf]
    %v89 = vld [vmem:[%s1 + $0x1c] sm:$0xf]
    %v90 = vld [vmem:[%s1 + $0x20] sm:$0xf]
    %v91 = vld [vmem:[%s1 + $0x24] sm:$0xf]
    %v92 = vld [vmem:[%s1 + $0x28] sm:$0xf]
    %v93 = vld [vmem:[%s1 + $0x2c] sm:$0xf]
    %v94 = vld [vmem:[%s1 + $0x30] sm:$0xf]
    %v95 = vld [vmem:[%s1 + $0x34] sm:$0xf]
    %v96 = vld [vmem:[%s1 + $0x38] sm:$0xf]
    %v97 = vld [vmem:[%s1 + $0x3c] sm:$0xf]
    %v98 = vld [vmem:[%s1 + $0x40] sm:$0xf]
    %v99 = vld [vmem:[%s1 + $0x44] sm:$0xf]
    %v100 = vld [vmem:[%s1 + $0x48] sm:$0xf]
    %v101 = vld [vmem:[%s1 + $0x4c] sm:$0xf]
    %v102 = vld [vmem:[%s1 + $0x50] sm:$0xf]
    %v103 = vld [vmem:[%s1 + $0x54] sm:$0xf]
    %v104 = vld [vmem:[%s1 + $0x58] sm:$0xf]
    %v105 = vld [vmem:[%s1 + $0x5c] sm:$0xf]
    %v106 = vld [vmem:[%s1 + $0x60] sm:$0xf]
    %v107 = vld [vmem:[%s1 + $0x64] sm:$0xf]
    %v108 = vld [vmem:[%s1 + $0x68] sm:$0xf]
    %v109 = vld [vmem:[%s1 + $0x6c] sm:$0xf]
    %v110 = vld [vmem:[%s1 + $0x70] sm:$0xf]
    %v111 = vld [vmem:[%s1 + $0x74] sm:$0xf]
    %v112 = vld [vmem:[%s1 + $0x78] sm:$0xf]
    %v113 = vld [vmem:[%s1 + $0x7c] sm:$0xf]
    %v114 = vld [vmem:[%s1 + $0x80] sm:$0xf]
    %v115 = vld [vmem:[%s1 + $0x84] sm:$0xf]
    %v116 = vld [vmem:[%s1 + $0x88] sm:$0xf]
    %v117 = vld [vmem:[%s1 + $0x8c] sm:$0xf]
    %v118 = vld [vmem:[%s1 + $0x90] sm:$0xf]
    %v119 = vld [vmem:[%s1 + $0x94] sm:$0xf]
    %v120 = vld [vmem:[%s1 + $0x98] sm:$0xf]
    %v121 = vld [vmem:[%s1 + $0x9c] sm:$0xf]
    %v122 = vld [vmem:[%s1 + $0xa0] sm:$0xf]
    %v123 = vld [vmem:[%s1 + $0xa4] sm:$0xf]
    %v124 = vld [vmem:[%s1 + $0xa8] sm:$0xf]
    %v125 = vld [vmem:[%s1 + $0xac] sm:$0xf]
    %v126 = vld [vmem:[%s1 + $0xb0] sm:$0xf]
    %v127 = vld [vmem:[%s1 + $0xb4] sm:$0xf]
    %v128 = vld [vmem:[%s1 + $0xb8] sm:$0xf]
    %v129 = vld [vmem:[%s1 + $0xbc] sm:$0xf]
    %v130 = vld [vmem:[%s1 + $0xc0] sm:$0xf]
    %v131 = vld [vmem:[%s1 + $0xc4] sm:$0xf]
    %v132 = vld [vmem:[%s1 + $0xc8] sm:$0xf]
    %v133 = vld [vmem:[%s1 + $0xcc] sm:$0xf]
    %v134 = vld [vmem:[%s1 + $0xd0] sm:$0xf]
    %v135 = vld [vmem:[%s1 + $0xd4] sm:$0xf]
    %v136 = vld [vmem:[%s1 + $0xd8] sm:$0xf]
    %v137 = vld [vmem:[%s1 + $0xdc] sm:$0xf]
    %v138 = vld [vmem:[%s1 + $0xe0] sm:$0xf]
    %v139 = vld [vmem:[%s1 + $0xe4] sm:$0xf]
    %v140 = vld [vmem:[%s1 + $0xe8] sm:$0xf]
    %v141 = vld [vmem:[%s1 + $0xec] sm:$0xf]
    %v142 = vld [vmem:[%s1 + $0xf0] sm:$0xf]
    %v143 = vld [vmem:[%s1 + $0xf4] sm:$0xf]
    %v144 = vld [vmem:[%s1 + $0xf8] sm:$0xf]
    %v145 = vld [vmem:[%s1 + $0xfc] sm:$0xf]
    %v146 = vld [vmem:[%s1 + $0x100] sm:$0xf]
    %v147 = vld [vmem:[%s1 + $0x104] sm:$0xf]
    %v148 = vld [vmem:[%s1 + $0x108] sm:$0xf]
    %v149 = vld [vmem:[%s1 + $0x10c] sm:$0xf]
    %v150 = vld [vmem:[%s1 + $0x110] sm:$0xf]
    %v151 = vld [vmem:[%s1 + $0x114] sm:$0xf]
    %v152 = vld [vmem:[%s1 + $0x118] sm:$0xf]
    %v153 = vld [vmem:[%s1 + $0x11c] sm:$0xf]
    %v154 = vld [vmem:[%s1 + $0x120] sm:$0xf]
    %v155 = vld [vmem:[%s1 + $0x124] sm:$0xf]
    %v156 = vld [vmem:[%s1 + $0x128] sm:$0xf]
    %v157 = vld [vmem:[%s1 + $0x12c] sm:$0xf]
    %v158 = vld [vmem:[%s1 + $0x130] sm:$0xf]
    %v159 = vld [vmem:[%s1 + $0x134] sm:$0xf]
    %v160 = vld [vmem:[%s1 + $0x138] sm:$0xf]
    %v161 = vld [vmem:[%s1 + $0x13c] sm:$0xf]
    %v162 = vld [vmem:[%s1 + $0x140] sm:$0xf]
    %v163 = vld [vmem:[%s1 + $0x144] sm:$0xf]
    %v164 = vld [vmem:[%s1 + $0x148] sm:$0xf]
    %v165 = vld [vmem:[%s1 + $0x14c] sm:$0xf]
    %v166 = vld [vmem:[%s1 + $0x150] sm:$0xf]
    %v167 = vld [vmem:[%s1 + $0x154] sm:$0xf]
    %v168 = vld [vmem:[%s1 + $0x158] sm:$0xf]
    %v169 = vld [vmem:[%s1 + $0x15c] sm:$0xf]
    %v170 = vld [vmem:[%s1 + $0x160] sm:$0xf]
    %v171 = vld [vmem:[%s1 + $0x164] sm:$0xf]
    %v172 = vld [vmem:[%s1 + $0x168] sm:$0xf]
    %v173 = vld [vmem:[%s1 + $0x16c] sm:$0xf]
    %v174 = vld [vmem:[%s1 + $0x170] sm:$0xf]
    %v175 = vld [vmem:[%s1 + $0x174] sm:$0xf]
    %v176 = vld [vmem:[%s1 + $0x178] sm:$0xf]
    %v177 = vld [vmem:[%s1 + $0x17c] sm:$0xf]
    %v178 = vld [vmem:[%s1 + $0x180] sm:$0xf]
    %v179 = vld [vmem:[%s1 + $0x184] sm:$0xf]
    %v180 = vld [vmem:[%s1 + $0x188] sm:$0xf]
    %v181 = vld [vmem:[%s1 + $0x18c] sm:$0xf]
    %v182 = vld [vmem:[%s1 + $0x190] sm:$0xf]
    %v183 = vld [vmem:[%s1 + $0x194] sm:$0xf]
    %v184 = vld [vmem:[%s1 + $0x198] sm:$0xf]
    %v185 = vld [vmem:[%s1 + $0x19c] sm:$0xf]
    %v186 = vld [vmem:[%s1 + $0x1a0] sm:$0xf]
    %v187 = vld [vmem:[%s1 + $0x1a4] sm:$0xf]
    %v188 = vld [vmem:[%s1 + $0x1a8] sm:$0xf]
    %v189 = vld [vmem:[%s1 + $0x1ac] sm:$0xf]
    %v190 = vld [vmem:[%s1 + $0x1b0] sm:$0xf]
    %v191 = vld [vmem:[%s1 + $0x1b4] sm:$0xf]
    %v192 = vld [vmem:[%s1 + $0x1b8] sm:$0xf]
    %v193 = vld [vmem:[%s1 + $0x1bc] sm:$0xf]
    %v194 = vld [vmem:[%s1 + $0x1c0] sm:$0xf]
    %v195 = vld [vmem:[%s1 + $0x1c4] sm:$0xf]
    %v196 = vld [vmem:[%s1 + $0x1c8] sm:$0xf]
    %v197 = vld [vmem:[%s1 + $0x1cc] sm:$0xf]
    %v198 = vld [vmem:[%s1 + $0x1d0] sm:$0xf]
    %v199 = vld [vmem:[%s1 + $0x1d4] sm:$0xf]
    %v200 = vld [vmem:[%s1 + $0x1d8] sm:$0xf]
    %v201 = vld [vmem:[%s1 + $0x1dc] sm:$0xf]
    %v202 = vld [vmem:[%s1 + $0x1e0] sm:$0xf]
    %v203 = vld [vmem:[%s1 + $0x1e4] sm:$0xf]
    %v204 = vld [vmem:[%s1 + $0x1e8] sm:$0xf]
    %v205 = vld [vmem:[%s1 + $0x1ec] sm:$0xf]
    %v206 = vld [vmem:[%s1 + $0x1f0] sm:$0xf]
    %v207 = vld [vmem:[%s1 + $0x1f4] sm:$0xf]
    %v208 = vld [vmem:[%s1 + $0x1f8] sm:$0xf]
    %v209 = vld [vmem:[%s1 + $0x1fc] sm:$0xf]
    %v210 = vld [vmem:[%s2] sm:$0x1]
    %v212 = vlaneseq
    %v213 = vshrl.u32 %v212, 7
    %v214 = vsub.s32 0, %v213
    %v215 = vrot.slane %v210, %v214
    %v345 = vunpack.c.l.b16 %v82
    %v346 = vunpack.c.l.b16 %v83
    %v347 = vunpack.c.l.b16 %v84
    %v348 = vunpack.c.l.b16 %v85
    %v349 = vunpack.c.l.b16 %v86
    %v350 = vunpack.c.l.b16 %v87
    %v351 = vunpack.c.l.b16 %v88
    %v352 = vunpack.c.l.b16 %v89
    %v353 = vunpack.c.l.b16 %v90
    %v354 = vunpack.c.l.b16 %v91
    %v355 = vunpack.c.l.b16 %v92
    %v356 = vunpack.c.l.b16 %v93
    %v357 = vunpack.c.l.b16 %v94
    %v358 = vunpack.c.l.b16 %v95
    %v359 = vunpack.c.l.b16 %v96
    %v360 = vunpack.c.l.b16 %v97
    %v361 = vunpack.c.l.b16 %v98
    %v362 = vunpack.c.l.b16 %v99
    %v363 = vunpack.c.l.b16 %v100
    %v364 = vunpack.c.l.b16 %v101
    %v365 = vunpack.c.l.b16 %v102
    %v366 = vunpack.c.l.b16 %v103
    %v367 = vunpack.c.l.b16 %v104
    %v368 = vunpack.c.l.b16 %v105
    %v369 = vunpack.c.l.b16 %v106
    %v370 = vunpack.c.l.b16 %v107
    %v371 = vunpack.c.l.b16 %v108
    %v372 = vunpack.c.l.b16 %v109
    %v373 = vunpack.c.l.b16 %v110
    %v374 = vunpack.c.l.b16 %v111
    %v375 = vunpack.c.l.b16 %v112
    %v376 = vunpack.c.l.b16 %v113
    %v377 = vunpack.c.l.b16 %v114
    %v378 = vunpack.c.l.b16 %v115
    %v379 = vunpack.c.l.b16 %v116
    %v380 = vunpack.c.l.b16 %v117
    %v381 = vunpack.c.l.b16 %v118
    %v382 = vunpack.c.l.b16 %v119
    %v383 = vunpack.c.l.b16 %v120
    %v384 = vunpack.c.l.b16 %v121
    %v385 = vunpack.c.l.b16 %v122
    %v386 = vunpack.c.l.b16 %v123
    %v387 = vunpack.c.l.b16 %v124
    %v388 = vunpack.c.l.b16 %v125
    %v389 = vunpack.c.l.b16 %v126
    %v390 = vunpack.c.l.b16 %v127
    %v391 = vunpack.c.l.b16 %v128
    %v392 = vunpack.c.l.b16 %v129
    %v393 = vunpack.c.l.b16 %v130
    %v394 = vunpack.c.l.b16 %v131
    %v395 = vunpack.c.l.b16 %v132
    %v396 = vunpack.c.l.b16 %v133
    %v397 = vunpack.c.l.b16 %v134
    %v398 = vunpack.c.l.b16 %v135
    %v399 = vunpack.c.l.b16 %v136
    %v400 = vunpack.c.l.b16 %v137
    %v401 = vunpack.c.l.b16 %v138
    %v402 = vunpack.c.l.b16 %v139
    %v403 = vunpack.c.l.b16 %v140
    %v404 = vunpack.c.l.b16 %v141
    %v405 = vunpack.c.l.b16 %v142
    %v406 = vunpack.c.l.b16 %v143
    %v407 = vunpack.c.l.b16 %v144
    %v408 = vunpack.c.l.b16 %v145
    %v409 = vunpack.c.l.b16 %v146
    %v410 = vunpack.c.l.b16 %v147
    %v411 = vunpack.c.l.b16 %v148
    %v412 = vunpack.c.l.b16 %v149
    %v413 = vunpack.c.l.b16 %v150
    %v414 = vunpack.c.l.b16 %v151
    %v415 = vunpack.c.l.b16 %v152
    %v416 = vunpack.c.l.b16 %v153
    %v417 = vunpack.c.l.b16 %v154
    %v418 = vunpack.c.l.b16 %v155
    %v419 = vunpack.c.l.b16 %v156
    %v420 = vunpack.c.l.b16 %v157
    %v421 = vunpack.c.l.b16 %v158
    %v422 = vunpack.c.l.b16 %v159
    %v423 = vunpack.c.l.b16 %v160
    %v424 = vunpack.c.l.b16 %v161
    %v425 = vunpack.c.l.b16 %v162
    %v426 = vunpack.c.l.b16 %v163
    %v427 = vunpack.c.l.b16 %v164
    %v428 = vunpack.c.l.b16 %v165
    %v429 = vunpack.c.l.b16 %v166
    %v430 = vunpack.c.l.b16 %v167
    %v431 = vunpack.c.l.b16 %v168
    %v432 = vunpack.c.l.b16 %v169
    %v433 = vunpack.c.l.b16 %v170
    %v434 = vunpack.c.l.b16 %v171
    %v435 = vunpack.c.l.b16 %v172
    %v436 = vunpack.c.l.b16 %v173
    %v437 = vunpack.c.l.b16 %v174
    %v438 = vunpack.c.l.b16 %v175
    %v439 = vunpack.c.l.b16 %v176
    %v440 = vunpack.c.l.b16 %v177
    %v441 = vunpack.c.l.b16 %v178
    %v442 = vunpack.c.l.b16 %v179
    %v443 = vunpack.c.l.b16 %v180
    %v444 = vunpack.c.l.b16 %v181
    %v445 = vunpack.c.l.b16 %v182
    %v446 = vunpack.c.l.b16 %v183
    %v447 = vunpack.c.l.b16 %v184
    %v448 = vunpack.c.l.b16 %v185
    %v449 = vunpack.c.l.b16 %v186
    %v450 = vunpack.c.l.b16 %v187
    %v451 = vunpack.c.l.b16 %v188
    %v452 = vunpack.c.l.b16 %v189
    %v453 = vunpack.c.l.b16 %v190
    %v454 = vunpack.c.l.b16 %v191
    %v455 = vunpack.c.l.b16 %v192
    %v456 = vunpack.c.l.b16 %v193
    %v457 = vunpack.c.l.b16 %v194
    %v458 = vunpack.c.l.b16 %v195
    %v459 = vunpack.c.l.b16 %v196
    %v460 = vunpack.c.l.b16 %v197
    %v461 = vunpack.c.l.b16 %v198
    %v462 = vunpack.c.l.b16 %v199
    %v463 = vunpack.c.l.b16 %v200
    %v464 = vunpack.c.l.b16 %v201
    %v465 = vunpack.c.l.b16 %v202
    %v466 = vunpack.c.l.b16 %v203
    %v467 = vunpack.c.l.b16 %v204
    %v468 = vunpack.c.l.b16 %v205
    %v469 = vunpack.c.l.b16 %v206
    %v470 = vunpack.c.l.b16 %v207
    %v471 = vunpack.c.l.b16 %v208
    %v472 = vunpack.c.l.b16 %v209
    %v473 = vpack.c.b16 %v346, %v345
    %v474 = vpack.c.b16 %v348, %v347
    %v475 = vpack.c.b16 %v350, %v349
    %v476 = vpack.c.b16 %v352, %v351
    %v477 = vpack.c.b16 %v354, %v353
    %v478 = vpack.c.b16 %v356, %v355
    %v479 = vpack.c.b16 %v358, %v357
    %v480 = vpack.c.b16 %v360, %v359
    %v481 = vpack.c.b16 %v362, %v361
    %v482 = vpack.c.b16 %v364, %v363
    %v483 = vpack.c.b16 %v366, %v365
    %v484 = vpack.c.b16 %v368, %v367
    %v485 = vpack.c.b16 %v370, %v369
    %v486 = vpack.c.b16 %v372, %v371
    %v487 = vpack.c.b16 %v374, %v373
    %v488 = vpack.c.b16 %v376, %v375
    %v489 = vpack.c.b16 %v378, %v377
    %v490 = vpack.c.b16 %v380, %v379
    %v491 = vpack.c.b16 %v382, %v381
    %v492 = vpack.c.b16 %v384, %v383
    %v493 = vpack.c.b16 %v386, %v385
    %v494 = vpack.c.b16 %v388, %v387
    %v495 = vpack.c.b16 %v390, %v389
    %v496 = vpack.c.b16 %v392, %v391
    %v497 = vpack.c.b16 %v394, %v393
    %v498 = vpack.c.b16 %v396, %v395
    %v499 = vpack.c.b16 %v398, %v397
    %v500 = vpack.c.b16 %v400, %v399
    %v501 = vpack.c.b16 %v402, %v401
    %v502 = vpack.c.b16 %v404, %v403
    %v503 = vpack.c.b16 %v406, %v405
    %v504 = vpack.c.b16 %v408, %v407
    %v505 = vpack.c.b16 %v410, %v409
    %v506 = vpack.c.b16 %v412, %v411
    %v507 = vpack.c.b16 %v414, %v413
    %v508 = vpack.c.b16 %v416, %v415
    %v509 = vpack.c.b16 %v418, %v417
    %v510 = vpack.c.b16 %v420, %v419
    %v511 = vpack.c.b16 %v422, %v421
    %v512 = vpack.c.b16 %v424, %v423
    %v513 = vpack.c.b16 %v426, %v425
    %v514 = vpack.c.b16 %v428, %v427
    %v515 = vpack.c.b16 %v430, %v429
    %v516 = vpack.c.b16 %v432, %v431
    %v517 = vpack.c.b16 %v434, %v433
    %v518 = vpack.c.b16 %v436, %v435
    %v519 = vpack.c.b16 %v438, %v437
    %v520 = vpack.c.b16 %v440, %v439
    %v521 = vpack.c.b16 %v442, %v441
    %v522 = vpack.c.b16 %v444, %v443
    %v523 = vpack.c.b16 %v446, %v445
    %v524 = vpack.c.b16 %v448, %v447
    %v525 = vpack.c.b16 %v450, %v449
    %v526 = vpack.c.b16 %v452, %v451
    %v527 = vpack.c.b16 %v454, %v453
    %v528 = vpack.c.b16 %v456, %v455
    %v529 = vpack.c.b16 %v458, %v457
    %v530 = vpack.c.b16 %v460, %v459
    %v531 = vpack.c.b16 %v462, %v461
    %v532 = vpack.c.b16 %v464, %v463
    %v533 = vpack.c.b16 %v466, %v465
    %v534 = vpack.c.b16 %v468, %v467
    %v535 = vpack.c.b16 %v470, %v469
    %v536 = vpack.c.b16 %v472, %v471
    %601 = vmatprep.subr.bf16.mxu0 0
    %602 = vmatpush1.bf16.msra.mxu0 %v473
    %603 = vmatprep.subr.bf16.mxu0 0
    %604 = vmatpush1.bf16.msra.mxu0 %v474
    %605 = vmatprep.subr.bf16.mxu0 0
    %606 = vmatpush1.bf16.msra.mxu0 %v475
    %607 = vmatprep.subr.bf16.mxu0 0
    %608 = vmatpush1.bf16.msra.mxu0 %v476
    %609 = vmatprep.subr.bf16.mxu0 0
    %610 = vmatpush1.bf16.msra.mxu0 %v477
    %611 = vmatprep.subr.bf16.mxu0 0
    %612 = vmatpush1.bf16.msra.mxu0 %v478
    %613 = vmatprep.subr.bf16.mxu0 0
    %614 = vmatpush1.bf16.msra.mxu0 %v479
    %615 = vmatprep.subr.bf16.mxu0 0
    %616 = vmatpush1.bf16.msra.mxu0 %v480
    %617 = vmatprep.subr.bf16.mxu0 0
    %618 = vmatpush1.bf16.msra.mxu0 %v481
    %619 = vmatprep.subr.bf16.mxu0 0
    %620 = vmatpush1.bf16.msra.mxu0 %v482
    %621 = vmatprep.subr.bf16.mxu0 0
    %622 = vmatpush1.bf16.msra.mxu0 %v483
    %623 = vmatprep.subr.bf16.mxu0 0
    %624 = vmatpush1.bf16.msra.mxu0 %v484
    %625 = vmatprep.subr.bf16.mxu0 0
    %626 = vmatpush1.bf16.msra.mxu0 %v485
    %627 = vmatprep.subr.bf16.mxu0 0
    %628 = vmatpush1.bf16.msra.mxu0 %v486
    %629 = vmatprep.subr.bf16.mxu0 0
    %630 = vmatpush1.bf16.msra.mxu0 %v487
    %631 = vmatprep.subr.bf16.mxu0 0
    %632 = vmatpush1.bf16.msra.mxu0 %v488
    %633 = vmatprep.mubr.bf16.mxu0 %v75
    %634 = vmatmul.mubr.bf16.gmra.mrb[0].mxu0 %v74
    %v635 = vpop.f32.mrb[0].mxu0
    %v636 = vadd.f32 %v215, %v635
    %v637 = vpop.f32.mrb[0].mxu0
    %v638 = vpop.f32.mrb[0].mxu0
    %v639 = vpop.f32.mrb[0].mxu0
    %640 = vdwg.mxu0
    %641 = vmatprep.subr.bf16.mxu0 0
    %642 = vmatpush1.bf16.msra.mxu0 %v489
    %643 = vmatprep.subr.bf16.mxu0 0
    %644 = vmatpush1.bf16.msra.mxu0 %v490
    %645 = vmatprep.subr.bf16.mxu0 0
    %646 = vmatpush1.bf16.msra.mxu0 %v491
    %647 = vmatprep.subr.bf16.mxu0 0
    %648 = vmatpush1.bf16.msra.mxu0 %v492
    %649 = vmatprep.subr.bf16.mxu0 0
    %650 = vmatpush1.bf16.msra.mxu0 %v493
    %651 = vmatprep.subr.bf16.mxu0 0
    %652 = vmatpush1.bf16.msra.mxu0 %v494
    %653 = vmatprep.subr.bf16.mxu0 0
    %654 = vmatpush1.bf16.msra.mxu0 %v495
    %655 = vmatprep.subr.bf16.mxu0 0
    %656 = vmatpush1.bf16.msra.mxu0 %v496
    %657 = vmatprep.subr.bf16.mxu0 0
    %658 = vmatpush1.bf16.msra.mxu0 %v497
    %659 = vmatprep.subr.bf16.mxu0 0
    %660 = vmatpush1.bf16.msra.mxu0 %v498
    %661 = vmatprep.subr.bf16.mxu0 0
    %662 = vmatpush1.bf16.msra.mxu0 %v499
    %663 = vmatprep.subr.bf16.mxu0 0
    %664 = vmatpush1.bf16.msra.mxu0 %v500
    %665 = vmatprep.subr.bf16.mxu0 0
    %666 = vmatpush1.bf16.msra.mxu0 %v501
    %667 = vmatprep.subr.bf16.mxu0 0
    %668 = vmatpush1.bf16.msra.mxu0 %v502
    %669 = vmatprep.subr.bf16.mxu0 0
    %670 = vmatpush1.bf16.msra.mxu0 %v503
    %671 = vmatprep.subr.bf16.mxu0 0
    %672 = vmatpush1.bf16.msra.mxu0 %v504
    %673 = vmatprep.mubr.bf16.mxu0 %v77
    %674 = vmatmul.mubr.bf16.gmra.mrb[0].mxu0 %v76
    %v675 = vpop.f32.mrb[0].mxu0
    %v676 = vadd.f32 %v636, %v675
    %v677 = vpop.f32.mrb[0].mxu0
    %v678 = vpop.f32.mrb[0].mxu0
    %v679 = vpop.f32.mrb[0].mxu0
    %680 = vdwg.mxu0
    %681 = vmatprep.subr.bf16.mxu0 0
    %682 = vmatpush1.bf16.msra.mxu0 %v505
    %683 = vmatprep.subr.bf16.mxu0 0
    %684 = vmatpush1.bf16.msra.mxu0 %v506
    %685 = vmatprep.subr.bf16.mxu0 0
    %686 = vmatpush1.bf16.msra.mxu0 %v507
    %687 = vmatprep.subr.bf16.mxu0 0
    %688 = vmatpush1.bf16.msra.mxu0 %v508
    %689 = vmatprep.subr.bf16.mxu0 0
    %690 = vmatpush1.bf16.msra.mxu0 %v509
    %691 = vmatprep.subr.bf16.mxu0 0
    %692 = vmatpush1.bf16.msra.mxu0 %v510
    %693 = vmatprep.subr.bf16.mxu0 0
    %694 = vmatpush1.bf16.msra.mxu0 %v511
    %695 = vmatprep.subr.bf16.mxu0 0
    %696 = vmatpush1.bf16.msra.mxu0 %v512
    %697 = vmatprep.subr.bf16.mxu0 0
    %698 = vmatpush1.bf16.msra.mxu0 %v513
    %699 = vmatprep.subr.bf16.mxu0 0
    %700 = vmatpush1.bf16.msra.mxu0 %v514
    %701 = vmatprep.subr.bf16.mxu0 0
    %702 = vmatpush1.bf16.msra.mxu0 %v515
    %703 = vmatprep.subr.bf16.mxu0 0
    %704 = vmatpush1.bf16.msra.mxu0 %v516
    %705 = vmatprep.subr.bf16.mxu0 0
    %706 = vmatpush1.bf16.msra.mxu0 %v517
    %707 = vmatprep.subr.bf16.mxu0 0
    %708 = vmatpush1.bf16.msra.mxu0 %v518
    %709 = vmatprep.subr.bf16.mxu0 0
    %710 = vmatpush1.bf16.msra.mxu0 %v519
    %711 = vmatprep.subr.bf16.mxu0 0
    %712 = vmatpush1.bf16.msra.mxu0 %v520
    %713 = vmatprep.mubr.bf16.mxu0 %v79
    %714 = vmatmul.mubr.bf16.gmra.mrb[0].mxu0 %v78
    %v715 = vpop.f32.mrb[0].mxu0
    %v716 = vadd.f32 %v676, %v715
    %v717 = vpop.f32.mrb[0].mxu0
    %v718 = vpop.f32.mrb[0].mxu0
    %v719 = vpop.f32.mrb[0].mxu0
    %720 = vdwg.mxu0
    %721 = vmatprep.subr.bf16.mxu0 0
    %722 = vmatpush1.bf16.msra.mxu0 %v521
    %723 = vmatprep.subr.bf16.mxu0 0
    %724 = vmatpush1.bf16.msra.mxu0 %v522
    %725 = vmatprep.subr.bf16.mxu0 0
    %726 = vmatpush1.bf16.msra.mxu0 %v523
    %727 = vmatprep.subr.bf16.mxu0 0
    %728 = vmatpush1.bf16.msra.mxu0 %v524
    %729 = vmatprep.subr.bf16.mxu0 0
    %730 = vmatpush1.bf16.msra.mxu0 %v525
    %731 = vmatprep.subr.bf16.mxu0 0
    %732 = vmatpush1.bf16.msra.mxu0 %v526
    %733 = vmatprep.subr.bf16.mxu0 0
    %734 = vmatpush1.bf16.msra.mxu0 %v527
    %735 = vmatprep.subr.bf16.mxu0 0
    %736 = vmatpush1.bf16.msra.mxu0 %v528
    %737 = vmatprep.subr.bf16.mxu0 0
    %738 = vmatpush1.bf16.msra.mxu0 %v529
    %739 = vmatprep.subr.bf16.mxu0 0
    %740 = vmatpush1.bf16.msra.mxu0 %v530
    %741 = vmatprep.subr.bf16.mxu0 0
    %742 = vmatpush1.bf16.msra.mxu0 %v531
    %743 = vmatprep.subr.bf16.mxu0 0
    %744 = vmatpush1.bf16.msra.mxu0 %v532
    %745 = vmatprep.subr.bf16.mxu0 0
    %746 = vmatpush1.bf16.msra.mxu0 %v533
    %747 = vmatprep.subr.bf16.mxu0 0
    %748 = vmatpush1.bf16.msra.mxu0 %v534
    %749 = vmatprep.subr.bf16.mxu0 0
    %750 = vmatpush1.bf16.msra.mxu0 %v535
    %751 = vmatprep.subr.bf16.mxu0 0
    %752 = vmatpush1.bf16.msra.mxu0 %v536
    %753 = vmatprep.mubr.bf16.mxu0 %v81
    %754 = vmatmul.mubr.bf16.gmra.mrb[0].mxu0 %v80
    %v755 = vpop.f32.mrb[0].mxu0
    %v756 = vadd.f32 %v716, %v755
    %v757 = vpop.f32.mrb[0].mxu0
    %v758 = vpop.f32.mrb[0].mxu0
    %v759 = vpop.f32.mrb[0].mxu0
    %760 = vdwg.mxu0
    %v761 = vmax.f32 %v756, 0.0
    %v762 = vpack.c.bf16 %v761, %v761
    %v763 = vld [vmem:[%s3] sm:$0xf]
    %v764 = vld [vmem:[%s3 + $0x4] sm:$0xf]
    %v765 = vld [vmem:[%s3 + $0x8] sm:$0xf]
    %v766 = vld [vmem:[%s3 + $0xc] sm:$0xf]
    %v767 = vld [vmem:[%s3 + $0x10] sm:$0xf]
    %v768 = vld [vmem:[%s3 + $0x14] sm:$0xf]
    %v769 = vld [vmem:[%s3 + $0x18] sm:$0xf]
    %v770 = vld [vmem:[%s3 + $0x1c] sm:$0xf]
    %v771 = vld [vmem:[%s4] sm:$0x1]
    %v773 = vlaneseq
    %v774 = vshrl.u32 %v773, 7
    %v775 = vsub.s32 0, %v774
    %v776 = vrot.slane %v771, %v775
    %v786 = vunpack.c.l.b16 %v763
    %v787 = vunpack.c.l.b16 %v764
    %v788 = vunpack.c.l.b16 %v765
    %v789 = vunpack.c.l.b16 %v766
    %v790 = vunpack.c.l.b16 %v767
    %v791 = vunpack.c.l.b16 %v768
    %v792 = vunpack.c.l.b16 %v769
    %v793 = vunpack.c.l.b16 %v770
    %v794 = vpack.c.b16 %v787, %v786
    %v795 = vpack.c.b16 %v789, %v788
    %v796 = vpack.c.b16 %v791, %v790
    %v797 = vpack.c.b16 %v793, %v792
    %vm802 = vcmask 523264
    %v804 = vsel %vm802, %v762, 0
    %806 = vmatprep.subr.bf16.mxu0 0
    %807 = vmatpush1.bf16.msra.mxu0 %v794
    %808 = vmatprep.subr.bf16.mxu0 0
    %809 = vmatpush1.bf16.msra.mxu0 %v795
    %810 = vmatprep.subr.bf16.mxu0 0
    %811 = vmatpush1.bf16.msra.mxu0 %v796
    %812 = vmatprep.subr.bf16.mxu0 0
    %813 = vmatpush1.bf16.msra.mxu0 %v797
    %814 = vmatprep.subr.bf16.mxu0 0
    %815 = vmatpush1.bf16.msra.mxu0 0
    %816 = vmatprep.subr.bf16.mxu0 0
    %817 = vmatpush1.bf16.msra.mxu0 0
    %818 = vmatprep.subr.bf16.mxu0 0
    %819 = vmatpush1.bf16.msra.mxu0 0
    %820 = vmatprep.subr.bf16.mxu0 0
    %821 = vmatpush1.bf16.msra.mxu0 0
    %822 = vmatprep.subr.bf16.mxu0 0
    %823 = vmatpush1.bf16.msra.mxu0 0
    %824 = vmatprep.subr.bf16.mxu0 0
    %825 = vmatpush1.bf16.msra.mxu0 0
    %826 = vmatprep.subr.bf16.mxu0 0
    %827 = vmatpush1.bf16.msra.mxu0 0
    %828 = vmatprep.subr.bf16.mxu0 0
    %829 = vmatpush1.bf16.msra.mxu0 0
    %830 = vmatprep.subr.bf16.mxu0 0
    %831 = vmatpush1.bf16.msra.mxu0 0
    %832 = vmatprep.subr.bf16.mxu0 0
    %833 = vmatpush1.bf16.msra.mxu0 0
    %834 = vmatprep.subr.bf16.mxu0 0
    %835 = vmatpush1.bf16.msra.mxu0 0
    %836 = vmatprep.subr.bf16.mxu0 0
    %837 = vmatpush1.bf16.msra.mxu0 0
    %838 = vmatprep.mubr.bf16.mxu0 0
    %839 = vmatmul.mubr.bf16.gmra.mrb[0].mxu0 %v804
    %v840 = vpop.f32.mrb[0].mxu0
    %v841 = vadd.f32 %v776, %v840
    %v842 = vpop.f32.mrb[0].mxu0
    %v843 = vpop.f32.mrb[0].mxu0
    %v844 = vpop.f32.mrb[0].mxu0
    %845 = vdwg.mxu0
    %v846 = vmax.f32 %v841, 0.0
    %v847 = vpack.c.bf16 %v846, %v846
    %v848 = vld [vmem:[%s5] sm:$0xf]
    %v849 = vld [vmem:[%s5 + $0x4] sm:$0xf]
    %v850 = vld [vmem:[%s5 + $0x8] sm:$0xf]
    %v851 = vld [vmem:[%s5 + $0xc] sm:$0xf]
    %v852 = vld [vmem:[%s5 + $0x10] sm:$0xf]
    %v853 = vld [vmem:[%s5 + $0x14] sm:$0xf]
    %v854 = vld [vmem:[%s5 + $0x18] sm:$0xf]
    %v855 = vld [vmem:[%s5 + $0x1c] sm:$0xf]
    %v856 = vld [vmem:[%s6] sm:$0x1]
    %v858 = vlaneseq
    %v859 = vshrl.u32 %v858, 7
    %v860 = vsub.s32 0, %v859
    %v861 = vrot.slane %v856, %v860
    %v871 = vunpack.c.l.b16 %v848
    %v872 = vunpack.c.l.b16 %v849
    %v873 = vunpack.c.l.b16 %v850
    %v874 = vunpack.c.l.b16 %v851
    %v875 = vunpack.c.l.b16 %v852
    %v876 = vunpack.c.l.b16 %v853
    %v877 = vunpack.c.l.b16 %v854
    %v878 = vunpack.c.l.b16 %v855
    %v879 = vpack.c.b16 %v872, %v871
    %v880 = vpack.c.b16 %v874, %v873
    %v881 = vpack.c.b16 %v876, %v875
    %v882 = vpack.c.b16 %v878, %v877
    %v888 = vsel %vm802, %v847, 0
    %890 = vmatprep.subr.bf16.mxu0 0
    %891 = vmatpush1.bf16.msra.mxu0 %v879
    %892 = vmatprep.subr.bf16.mxu0 0
    %893 = vmatpush1.bf16.msra.mxu0 %v880
    %894 = vmatprep.subr.bf16.mxu0 0
    %895 = vmatpush1.bf16.msra.mxu0 %v881
    %896 = vmatprep.subr.bf16.mxu0 0
    %897 = vmatpush1.bf16.msra.mxu0 %v882
    %898 = vmatprep.subr.bf16.mxu0 0
    %899 = vmatpush1.bf16.msra.mxu0 0
    %900 = vmatprep.subr.bf16.mxu0 0
    %901 = vmatpush1.bf16.msra.mxu0 0
    %902 = vmatprep.subr.bf16.mxu0 0
    %903 = vmatpush1.bf16.msra.mxu0 0
    %904 = vmatprep.subr.bf16.mxu0 0
    %905 = vmatpush1.bf16.msra.mxu0 0
    %906 = vmatprep.subr.bf16.mxu0 0
    %907 = vmatpush1.bf16.msra.mxu0 0
    %908 = vmatprep.subr.bf16.mxu0 0
    %909 = vmatpush1.bf16.msra.mxu0 0
    %910 = vmatprep.subr.bf16.mxu0 0
    %911 = vmatpush1.bf16.msra.mxu0 0
    %912 = vmatprep.subr.bf16.mxu0 0
    %913 = vmatpush1.bf16.msra.mxu0 0
    %914 = vmatprep.subr.bf16.mxu0 0
    %915 = vmatpush1.bf16.msra.mxu0 0
    %916 = vmatprep.subr.bf16.mxu0 0
    %917 = vmatpush1.bf16.msra.mxu0 0
    %918 = vmatprep.subr.bf16.mxu0 0
    %919 = vmatpush1.bf16.msra.mxu0 0
    %920 = vmatprep.subr.bf16.mxu0 0
    %921 = vmatpush1.bf16.msra.mxu0 0
    %922 = vmatprep.mubr.bf16.mxu0 0
    %923 = vmatmul.mubr.bf16.gmra.mrb[0].mxu0 %v888
    %v924 = vpop.f32.mrb[0].mxu0
    %v925 = vadd.f32 %v861, %v924
    %v926 = vpop.f32.mrb[0].mxu0
    %v927 = vpop.f32.mrb[0].mxu0
    %v928 = vpop.f32.mrb[0].mxu0
    %929 = vdwg.mxu0
    %930 = vst [vmem:[#allocation2] sm:$0x3] %v925
    // Predicated region
    $region30: #{tpu_custom_call.1} parent=1 // pred_check
      _
    $region31: #{tpu_custom_call.1} parent=1 // pred_check_branch
      %932 = sbr.rel (0) target = $region33
    $region32: #{tpu_custom_call.1} parent=1 // pred_region
      %s934 = ssub.s32 32, 32
      %935 = vsyncadd [#allocation3], %s934
      %s937 = sshll.u32 [#allocation2], 4
      %s938 = int_to_ptr.vmem [resolvable:$true] %s937
      %940 = dma.vmem_to_hbm [thread:$0]  %s938, 32, %s7, [#allocation3]
    $region33: #{tpu_custom_call.1} parent=1 // pred_fallthru
      _
    // Predicated region
    $region34: #{tpu_custom_call.1} parent=1 // pred_check
      _
    $region35: #{tpu_custom_call.1} parent=1 // pred_check_branch
      %942 = sbr.rel (0) target = $region37
    $region36: #{tpu_custom_call.1} parent=1 // pred_region
      %943 = dma.done [#allocation3], 32
    $region37: #{tpu_custom_call.1} parent=1 // pred_fallthru
      _
    %944 = vsyncpa [#allocation3], 1

// kernel: tpu_custom_call.1
$region0: #{tpu_custom_call.1}
  #allocation0 [shape = 'u32[]', space=smem, size = 0x4, offset = 0x4, fixed_abs, tag = 'smem constant byte address 0x4 - core index']
  #allocation1 [shape = 'u32[144,128]{1,0:T(1,128)}', space=vmem, size = 0x12000, scoped, tag = 'internal scratch']
  %s0 = inlined_call_operand.vmem [shape: f32[2,1024], index: 0, kind: input, shape index: {}]
  %s1 = inlined_call_operand.vmem [shape: bf16[1024,64], index: 1, kind: input, shape index: {}]
  %s2 = inlined_call_operand.vmem [shape: f32[1,64], index: 2, kind: input, shape index: {}]
  %s3 = inlined_call_operand.vmem [shape: bf16[64,64], index: 3, kind: input, shape index: {}]
  %s4 = inlined_call_operand.vmem [shape: f32[1,64], index: 4, kind: input, shape index: {}]
  %s5 = inlined_call_operand.vmem [shape: bf16[64,128], index: 5, kind: input, shape index: {}]
  %s6 = inlined_call_operand.vmem [shape: f32[1,128], index: 6, kind: input, shape index: {}]
  %s7 = inlined_call_operand.hbm [shape: f32[2,128], index: 7, kind: output, shape index: {}]
  %s8 = sld [smem:[#allocation0]]
  $region38: #{tpu_custom_call.1} parent=0
    _
  %s10 = ssub.s32 1, %s8
  %s11 = scalar_select 0, %s10, %s8
  $region1: #{tpu_custom_call.1} parent=0
    #allocation2 [shape = 'u8[1024]{0}', space=vmem, size = 0x400, scoped, tag = 'output window, operand 0, single buffered']
    #allocation3 [shape = 's32[1]{0}', space=sflag, size = 0x4, scoped, tag = 'scoped memory for tpu_custom_call.1']
    %12 = vsyncpa [#allocation3], 0
    // Predicated region
    $region2: #{tpu_custom_call.1} parent=1 // pred_check
      _
    $region3: #{tpu_custom_call.1} parent=1 // pred_check_branch
      %14 = sbr.rel (0) target = $region5
    $region4: #{tpu_custom_call.1} parent=1 // pred_region
      _
    $region5: #{tpu_custom_call.1} parent=1 // pred_fallthru
      _
    // Predicated region
    $region6: #{tpu_custom_call.1} parent=1 // pred_check
      _
    $region7: #{tpu_custom_call.1} parent=1 // pred_check_branch
      %16 = sbr.rel (0) target = $region9
    $region8: #{tpu_custom_call.1} parent=1 // pred_region
      _
    $region9: #{tpu_custom_call.1} parent=1 // pred_fallthru
      _
    // Predicated region
    $region10: #{tpu_custom_call.1} parent=1 // pred_check
      _
    $region11: #{tpu_custom_call.1} parent=1 // pred_check_branch
      %18 = sbr.rel (0) target = $region13
    $region12: #{tpu_custom_call.1} parent=1 // pred_region
      _
    $region13: #{tpu_custom_call.1} parent=1 // pred_fallthru
      _
    // Predicated region
    $region14: #{tpu_custom_call.1} parent=1 // pred_check
      _
    $region15: #{tpu_custom_call.1} parent=1 // pred_check_branch
      %20 = sbr.rel (0) target = $region17
    $region16: #{tpu_custom_call.1} parent=1 // pred_region
      _
    $region17: #{tpu_custom_call.1} parent=1 // pred_fallthru
      _
    // Predicated region
    $region18: #{tpu_custom_call.1} parent=1 // pred_check
      _
    $region19: #{tpu_custom_call.1} parent=1 // pred_check_branch
      %22 = sbr.rel (0) target = $region21
    $region20: #{tpu_custom_call.1} parent=1 // pred_region
      _
    $region21: #{tpu_custom_call.1} parent=1 // pred_fallthru
      _
    // Predicated region
    $region22: #{tpu_custom_call.1} parent=1 // pred_check
      _
    $region23: #{tpu_custom_call.1} parent=1 // pred_check_branch
      %24 = sbr.rel (0) target = $region25
    $region24: #{tpu_custom_call.1} parent=1 // pred_region
      _
    $region25: #{tpu_custom_call.1} parent=1 // pred_fallthru
      _
    // Predicated region
    $region26: #{tpu_custom_call.1} parent=1 // pred_check
      _
    $region27: #{tpu_custom_call.1} parent=1 // pred_check_branch
      %26 = sbr.rel (0) target = $region29
    $region28: #{tpu_custom_call.1} parent=1 // pred_region
      _
    $region29: #{tpu_custom_call.1} parent=1 // pred_fallthru
      _
    %v28 = vld [vmem:[%s0] sm:$0xff]
    %v29 = vld [vmem:[%s0 + $0x8] sm:$0xff]
    %v32 = vcombine.high %v28, %v28
    %v34 = vunpack.c.l.s4 1983009808
    %v35 = vunpack.c.0.s8 %v34
    %v36 = vlaneseq
    %v37 = vshrl.u32 %v36, 7
    %v38 = vsub.s32 %v35, %v37
    %v39 = vrot.slane %v28, %v38
    %v41 = vunpack.c.l.s4 1983009808
    %v42 = vunpack.c.0.s8 %v41
    %v43 = vlaneseq
    %v44 = vshrl.u32 %v43, 7
    %v45 = vsub.s32 %v42, %v44
    %v46 = vrot.slane %v32, %v45
    %v47 = vcombine.high %v39, %v39
    %v48 = vcombine.high %v46, %v46
    %v49 = vcombine.high %v29, %v29
    %v51 = vunpack.c.l.s4 1983009808
    %v52 = vunpack.c.0.s8 %v51
    %v53 = vlaneseq
    %v54 = vshrl.u32 %v53, 7
    %v55 = vsub.s32 %v52, %v54
    %v56 = vrot.slane %v29, %v55
    %v58 = vunpack.c.l.s4 1983009808
    %v59 = vunpack.c.0.s8 %v58
    %v60 = vlaneseq
    %v61 = vshrl.u32 %v60, 7
    %v62 = vsub.s32 %v59, %v61
    %v63 = vrot.slane %v49, %v62
    %v64 = vcombine.high %v56, %v56
    %v65 = vcombine.high %v63, %v63
    %v74 = vpack.c.bf16 %v39, %v39
    %v75 = vpack.c.bf16 %v47, %v47
    %v76 = vpack.c.bf16 %v46, %v46
    %v77 = vpack.c.bf16 %v48, %v48
    %v78 = vpack.c.bf16 %v56, %v56
    %v79 = vpack.c.bf16 %v64, %v64
    %v80 = vpack.c.bf16 %v63, %v63
    %v81 = vpack.c.bf16 %v65, %v65
    %v82 = vld [vmem:[%s1] sm:$0xf]
    %v83 = vld [vmem:[%s1 + $0x4] sm:$0xf]
    %v84 = vld [vmem:[%s1 + $0x8] sm:$0xf]
    %v85 = vld [vmem:[%s1 + $0xc] sm:$0xf]
    %v86 = vld [vmem:[%s1 + $0x10] sm:$0xf]
    %v87 = vld [vmem:[%s1 + $0x14] sm:$0xf]
    %v88 = vld [vmem:[%s1 + $0x18] sm:$0xf]
    %v89 = vld [vmem:[%s1 + $0x1c] sm:$0xf]
    %v90 = vld [vmem:[%s1 + $0x20] sm:$0xf]
    %v91 = vld [vmem:[%s1 + $0x24] sm:$0xf]
    %v92 = vld [vmem:[%s1 + $0x28] sm:$0xf]
    %v93 = vld [vmem:[%s1 + $0x2c] sm:$0xf]
    %v94 = vld [vmem:[%s1 + $0x30] sm:$0xf]
    %v95 = vld [vmem:[%s1 + $0x34] sm:$0xf]
    %v96 = vld [vmem:[%s1 + $0x38] sm:$0xf]
    %v97 = vld [vmem:[%s1 + $0x3c] sm:$0xf]
    %v98 = vld [vmem:[%s1 + $0x40] sm:$0xf]
    %v99 = vld [vmem:[%s1 + $0x44] sm:$0xf]
    %v100 = vld [vmem:[%s1 + $0x48] sm:$0xf]
    %v101 = vld [vmem:[%s1 + $0x4c] sm:$0xf]
    %v102 = vld [vmem:[%s1 + $0x50] sm:$0xf]
    %v103 = vld [vmem:[%s1 + $0x54] sm:$0xf]
    %v104 = vld [vmem:[%s1 + $0x58] sm:$0xf]
    %v105 = vld [vmem:[%s1 + $0x5c] sm:$0xf]
    %v106 = vld [vmem:[%s1 + $0x60] sm:$0xf]
    %v107 = vld [vmem:[%s1 + $0x64] sm:$0xf]
    %v108 = vld [vmem:[%s1 + $0x68] sm:$0xf]
    %v109 = vld [vmem:[%s1 + $0x6c] sm:$0xf]
    %v110 = vld [vmem:[%s1 + $0x70] sm:$0xf]
    %v111 = vld [vmem:[%s1 + $0x74] sm:$0xf]
    %v112 = vld [vmem:[%s1 + $0x78] sm:$0xf]
    %v113 = vld [vmem:[%s1 + $0x7c] sm:$0xf]
    %v114 = vld [vmem:[%s1 + $0x80] sm:$0xf]
    %v115 = vld [vmem:[%s1 + $0x84] sm:$0xf]
    %v116 = vld [vmem:[%s1 + $0x88] sm:$0xf]
    %v117 = vld [vmem:[%s1 + $0x8c] sm:$0xf]
    %v118 = vld [vmem:[%s1 + $0x90] sm:$0xf]
    %v119 = vld [vmem:[%s1 + $0x94] sm:$0xf]
    %v120 = vld [vmem:[%s1 + $0x98] sm:$0xf]
    %v121 = vld [vmem:[%s1 + $0x9c] sm:$0xf]
    %v122 = vld [vmem:[%s1 + $0xa0] sm:$0xf]
    %v123 = vld [vmem:[%s1 + $0xa4] sm:$0xf]
    %v124 = vld [vmem:[%s1 + $0xa8] sm:$0xf]
    %v125 = vld [vmem:[%s1 + $0xac] sm:$0xf]
    %v126 = vld [vmem:[%s1 + $0xb0] sm:$0xf]
    %v127 = vld [vmem:[%s1 + $0xb4] sm:$0xf]
    %v128 = vld [vmem:[%s1 + $0xb8] sm:$0xf]
    %v129 = vld [vmem:[%s1 + $0xbc] sm:$0xf]
    %v130 = vld [vmem:[%s1 + $0xc0] sm:$0xf]
    %v131 = vld [vmem:[%s1 + $0xc4] sm:$0xf]
    %v132 = vld [vmem:[%s1 + $0xc8] sm:$0xf]
    %v133 = vld [vmem:[%s1 + $0xcc] sm:$0xf]
    %v134 = vld [vmem:[%s1 + $0xd0] sm:$0xf]
    %v135 = vld [vmem:[%s1 + $0xd4] sm:$0xf]
    %v136 = vld [vmem:[%s1 + $0xd8] sm:$0xf]
    %v137 = vld [vmem:[%s1 + $0xdc] sm:$0xf]
    %v138 = vld [vmem:[%s1 + $0xe0] sm:$0xf]
    %v139 = vld [vmem:[%s1 + $0xe4] sm:$0xf]
    %v140 = vld [vmem:[%s1 + $0xe8] sm:$0xf]
    %v141 = vld [vmem:[%s1 + $0xec] sm:$0xf]
    %v142 = vld [vmem:[%s1 + $0xf0] sm:$0xf]
    %v143 = vld [vmem:[%s1 + $0xf4] sm:$0xf]
    %v144 = vld [vmem:[%s1 + $0xf8] sm:$0xf]
    %v145 = vld [vmem:[%s1 + $0xfc] sm:$0xf]
    %v146 = vld [vmem:[%s1 + $0x100] sm:$0xf]
    %v147 = vld [vmem:[%s1 + $0x104] sm:$0xf]
    %v148 = vld [vmem:[%s1 + $0x108] sm:$0xf]
    %v149 = vld [vmem:[%s1 + $0x10c] sm:$0xf]
    %v150 = vld [vmem:[%s1 + $0x110] sm:$0xf]
    %v151 = vld [vmem:[%s1 + $0x114] sm:$0xf]
    %v152 = vld [vmem:[%s1 + $0x118] sm:$0xf]
    %v153 = vld [vmem:[%s1 + $0x11c] sm:$0xf]
    %v154 = vld [vmem:[%s1 + $0x120] sm:$0xf]
    %v155 = vld [vmem:[%s1 + $0x124] sm:$0xf]
    %v156 = vld [vmem:[%s1 + $0x128] sm:$0xf]
    %v157 = vld [vmem:[%s1 + $0x12c] sm:$0xf]
    %v158 = vld [vmem:[%s1 + $0x130] sm:$0xf]
    %v159 = vld [vmem:[%s1 + $0x134] sm:$0xf]
    %v160 = vld [vmem:[%s1 + $0x138] sm:$0xf]
    %v161 = vld [vmem:[%s1 + $0x13c] sm:$0xf]
    %v162 = vld [vmem:[%s1 + $0x140] sm:$0xf]
    %v163 = vld [vmem:[%s1 + $0x144] sm:$0xf]
    %v164 = vld [vmem:[%s1 + $0x148] sm:$0xf]
    %v165 = vld [vmem:[%s1 + $0x14c] sm:$0xf]
    %v166 = vld [vmem:[%s1 + $0x150] sm:$0xf]
    %v167 = vld [vmem:[%s1 + $0x154] sm:$0xf]
    %v168 = vld [vmem:[%s1 + $0x158] sm:$0xf]
    %v169 = vld [vmem:[%s1 + $0x15c] sm:$0xf]
    %v170 = vld [vmem:[%s1 + $0x160] sm:$0xf]
    %v171 = vld [vmem:[%s1 + $0x164] sm:$0xf]
    %v172 = vld [vmem:[%s1 + $0x168] sm:$0xf]
    %v173 = vld [vmem:[%s1 + $0x16c] sm:$0xf]
    %v174 = vld [vmem:[%s1 + $0x170] sm:$0xf]
    %v175 = vld [vmem:[%s1 + $0x174] sm:$0xf]
    %v176 = vld [vmem:[%s1 + $0x178] sm:$0xf]
    %v177 = vld [vmem:[%s1 + $0x17c] sm:$0xf]
    %v178 = vld [vmem:[%s1 + $0x180] sm:$0xf]
    %v179 = vld [vmem:[%s1 + $0x184] sm:$0xf]
    %v180 = vld [vmem:[%s1 + $0x188] sm:$0xf]
    %v181 = vld [vmem:[%s1 + $0x18c] sm:$0xf]
    %v182 = vld [vmem:[%s1 + $0x190] sm:$0xf]
    %v183 = vld [vmem:[%s1 + $0x194] sm:$0xf]
    %v184 = vld [vmem:[%s1 + $0x198] sm:$0xf]
    %v185 = vld [vmem:[%s1 + $0x19c] sm:$0xf]
    %v186 = vld [vmem:[%s1 + $0x1a0] sm:$0xf]
    %v187 = vld [vmem:[%s1 + $0x1a4] sm:$0xf]
    %v188 = vld [vmem:[%s1 + $0x1a8] sm:$0xf]
    %v189 = vld [vmem:[%s1 + $0x1ac] sm:$0xf]
    %v190 = vld [vmem:[%s1 + $0x1b0] sm:$0xf]
    %v191 = vld [vmem:[%s1 + $0x1b4] sm:$0xf]
    %v192 = vld [vmem:[%s1 + $0x1b8] sm:$0xf]
    %v193 = vld [vmem:[%s1 + $0x1bc] sm:$0xf]
    %v194 = vld [vmem:[%s1 + $0x1c0] sm:$0xf]
    %v195 = vld [vmem:[%s1 + $0x1c4] sm:$0xf]
    %v196 = vld [vmem:[%s1 + $0x1c8] sm:$0xf]
    %v197 = vld [vmem:[%s1 + $0x1cc] sm:$0xf]
    %v198 = vld [vmem:[%s1 + $0x1d0] sm:$0xf]
    %v199 = vld [vmem:[%s1 + $0x1d4] sm:$0xf]
    %v200 = vld [vmem:[%s1 + $0x1d8] sm:$0xf]
    %v201 = vld [vmem:[%s1 + $0x1dc] sm:$0xf]
    %v202 = vld [vmem:[%s1 + $0x1e0] sm:$0xf]
    %v203 = vld [vmem:[%s1 + $0x1e4] sm:$0xf]
    %v204 = vld [vmem:[%s1 + $0x1e8] sm:$0xf]
    %v205 = vld [vmem:[%s1 + $0x1ec] sm:$0xf]
    %v206 = vld [vmem:[%s1 + $0x1f0] sm:$0xf]
    %v207 = vld [vmem:[%s1 + $0x1f4] sm:$0xf]
    %v208 = vld [vmem:[%s1 + $0x1f8] sm:$0xf]
    %v209 = vld [vmem:[%s1 + $0x1fc] sm:$0xf]
    %v210 = vld [vmem:[%s2] sm:$0x1]
    %v212 = vlaneseq
    %v213 = vshrl.u32 %v212, 7
    %v214 = vsub.s32 0, %v213
    %v215 = vrot.slane %v210, %v214
    %v345 = vunpack.c.l.b16 %v82
    %v346 = vunpack.c.l.b16 %v83
    %v347 = vunpack.c.l.b16 %v84
    %v348 = vunpack.c.l.b16 %v85
    %v349 = vunpack.c.l.b16 %v86
    %v350 = vunpack.c.l.b16 %v87
    %v351 = vunpack.c.l.b16 %v88
    %v352 = vunpack.c.l.b16 %v89
    %v353 = vunpack.c.l.b16 %v90
    %v354 = vunpack.c.l.b16 %v91
    %v355 = vunpack.c.l.b16 %v92
    %v356 = vunpack.c.l.b16 %v93
    %v357 = vunpack.c.l.b16 %v94
    %v358 = vunpack.c.l.b16 %v95
    %v359 = vunpack.c.l.b16 %v96
    %v360 = vunpack.c.l.b16 %v97
    %v361 = vunpack.c.l.b16 %v98
    %v362 = vunpack.c.l.b16 %v99
    %v363 = vunpack.c.l.b16 %v100
    %v364 = vunpack.c.l.b16 %v101
    %v365 = vunpack.c.l.b16 %v102
    %v366 = vunpack.c.l.b16 %v103
    %v367 = vunpack.c.l.b16 %v104
    %v368 = vunpack.c.l.b16 %v105
    %v369 = vunpack.c.l.b16 %v106
    %v370 = vunpack.c.l.b16 %v107
    %v371 = vunpack.c.l.b16 %v108
    %v372 = vunpack.c.l.b16 %v109
    %v373 = vunpack.c.l.b16 %v110
    %v374 = vunpack.c.l.b16 %v111
    %v375 = vunpack.c.l.b16 %v112
    %v376 = vunpack.c.l.b16 %v113
    %v377 = vunpack.c.l.b16 %v114
    %v378 = vunpack.c.l.b16 %v115
    %v379 = vunpack.c.l.b16 %v116
    %v380 = vunpack.c.l.b16 %v117
    %v381 = vunpack.c.l.b16 %v118
    %v382 = vunpack.c.l.b16 %v119
    %v383 = vunpack.c.l.b16 %v120
    %v384 = vunpack.c.l.b16 %v121
    %v385 = vunpack.c.l.b16 %v122
    %v386 = vunpack.c.l.b16 %v123
    %v387 = vunpack.c.l.b16 %v124
    %v388 = vunpack.c.l.b16 %v125
    %v389 = vunpack.c.l.b16 %v126
    %v390 = vunpack.c.l.b16 %v127
    %v391 = vunpack.c.l.b16 %v128
    %v392 = vunpack.c.l.b16 %v129
    %v393 = vunpack.c.l.b16 %v130
    %v394 = vunpack.c.l.b16 %v131
    %v395 = vunpack.c.l.b16 %v132
    %v396 = vunpack.c.l.b16 %v133
    %v397 = vunpack.c.l.b16 %v134
    %v398 = vunpack.c.l.b16 %v135
    %v399 = vunpack.c.l.b16 %v136
    %v400 = vunpack.c.l.b16 %v137
    %v401 = vunpack.c.l.b16 %v138
    %v402 = vunpack.c.l.b16 %v139
    %v403 = vunpack.c.l.b16 %v140
    %v404 = vunpack.c.l.b16 %v141
    %v405 = vunpack.c.l.b16 %v142
    %v406 = vunpack.c.l.b16 %v143
    %v407 = vunpack.c.l.b16 %v144
    %v408 = vunpack.c.l.b16 %v145
    %v409 = vunpack.c.l.b16 %v146
    %v410 = vunpack.c.l.b16 %v147
    %v411 = vunpack.c.l.b16 %v148
    %v412 = vunpack.c.l.b16 %v149
    %v413 = vunpack.c.l.b16 %v150
    %v414 = vunpack.c.l.b16 %v151
    %v415 = vunpack.c.l.b16 %v152
    %v416 = vunpack.c.l.b16 %v153
    %v417 = vunpack.c.l.b16 %v154
    %v418 = vunpack.c.l.b16 %v155
    %v419 = vunpack.c.l.b16 %v156
    %v420 = vunpack.c.l.b16 %v157
    %v421 = vunpack.c.l.b16 %v158
    %v422 = vunpack.c.l.b16 %v159
    %v423 = vunpack.c.l.b16 %v160
    %v424 = vunpack.c.l.b16 %v161
    %v425 = vunpack.c.l.b16 %v162
    %v426 = vunpack.c.l.b16 %v163
    %v427 = vunpack.c.l.b16 %v164
    %v428 = vunpack.c.l.b16 %v165
    %v429 = vunpack.c.l.b16 %v166
    %v430 = vunpack.c.l.b16 %v167
    %v431 = vunpack.c.l.b16 %v168
    %v432 = vunpack.c.l.b16 %v169
    %v433 = vunpack.c.l.b16 %v170
    %v434 = vunpack.c.l.b16 %v171
    %v435 = vunpack.c.l.b16 %v172
    %v436 = vunpack.c.l.b16 %v173
    %v437 = vunpack.c.l.b16 %v174
    %v438 = vunpack.c.l.b16 %v175
    %v439 = vunpack.c.l.b16 %v176
    %v440 = vunpack.c.l.b16 %v177
    %v441 = vunpack.c.l.b16 %v178
    %v442 = vunpack.c.l.b16 %v179
    %v443 = vunpack.c.l.b16 %v180
    %v444 = vunpack.c.l.b16 %v181
    %v445 = vunpack.c.l.b16 %v182
    %v446 = vunpack.c.l.b16 %v183
    %v447 = vunpack.c.l.b16 %v184
    %v448 = vunpack.c.l.b16 %v185
    %v449 = vunpack.c.l.b16 %v186
    %v450 = vunpack.c.l.b16 %v187
    %v451 = vunpack.c.l.b16 %v188
    %v452 = vunpack.c.l.b16 %v189
    %v453 = vunpack.c.l.b16 %v190
    %v454 = vunpack.c.l.b16 %v191
    %v455 = vunpack.c.l.b16 %v192
    %v456 = vunpack.c.l.b16 %v193
    %v457 = vunpack.c.l.b16 %v194
    %v458 = vunpack.c.l.b16 %v195
    %v459 = vunpack.c.l.b16 %v196
    %v460 = vunpack.c.l.b16 %v197
    %v461 = vunpack.c.l.b16 %v198
    %v462 = vunpack.c.l.b16 %v199
    %v463 = vunpack.c.l.b16 %v200
    %v464 = vunpack.c.l.b16 %v201
    %v465 = vunpack.c.l.b16 %v202
    %v466 = vunpack.c.l.b16 %v203
    %v467 = vunpack.c.l.b16 %v204
    %v468 = vunpack.c.l.b16 %v205
    %v469 = vunpack.c.l.b16 %v206
    %v470 = vunpack.c.l.b16 %v207
    %v471 = vunpack.c.l.b16 %v208
    %v472 = vunpack.c.l.b16 %v209
    %v473 = vpack.c.b16 %v346, %v345
    %v474 = vpack.c.b16 %v348, %v347
    %v475 = vpack.c.b16 %v350, %v349
    %v476 = vpack.c.b16 %v352, %v351
    %v477 = vpack.c.b16 %v354, %v353
    %v478 = vpack.c.b16 %v356, %v355
    %v479 = vpack.c.b16 %v358, %v357
    %v480 = vpack.c.b16 %v360, %v359
    %v481 = vpack.c.b16 %v362, %v361
    %v482 = vpack.c.b16 %v364, %v363
    %v483 = vpack.c.b16 %v366, %v365
    %v484 = vpack.c.b16 %v368, %v367
    %v485 = vpack.c.b16 %v370, %v369
    %v486 = vpack.c.b16 %v372, %v371
    %v487 = vpack.c.b16 %v374, %v373
    %v488 = vpack.c.b16 %v376, %v375
    %v489 = vpack.c.b16 %v378, %v377
    %v490 = vpack.c.b16 %v380, %v379
    %v491 = vpack.c.b16 %v382, %v381
    %v492 = vpack.c.b16 %v384, %v383
    %v493 = vpack.c.b16 %v386, %v385
    %v494 = vpack.c.b16 %v388, %v387
    %v495 = vpack.c.b16 %v390, %v389
    %v496 = vpack.c.b16 %v392, %v391
    %v497 = vpack.c.b16 %v394, %v393
    %v498 = vpack.c.b16 %v396, %v395
    %v499 = vpack.c.b16 %v398, %v397
    %v500 = vpack.c.b16 %v400, %v399
    %v501 = vpack.c.b16 %v402, %v401
    %v502 = vpack.c.b16 %v404, %v403
    %v503 = vpack.c.b16 %v406, %v405
    %v504 = vpack.c.b16 %v408, %v407
    %v505 = vpack.c.b16 %v410, %v409
    %v506 = vpack.c.b16 %v412, %v411
    %v507 = vpack.c.b16 %v414, %v413
    %v508 = vpack.c.b16 %v416, %v415
    %v509 = vpack.c.b16 %v418, %v417
    %v510 = vpack.c.b16 %v420, %v419
    %v511 = vpack.c.b16 %v422, %v421
    %v512 = vpack.c.b16 %v424, %v423
    %v513 = vpack.c.b16 %v426, %v425
    %v514 = vpack.c.b16 %v428, %v427
    %v515 = vpack.c.b16 %v430, %v429
    %v516 = vpack.c.b16 %v432, %v431
    %v517 = vpack.c.b16 %v434, %v433
    %v518 = vpack.c.b16 %v436, %v435
    %v519 = vpack.c.b16 %v438, %v437
    %v520 = vpack.c.b16 %v440, %v439
    %v521 = vpack.c.b16 %v442, %v441
    %v522 = vpack.c.b16 %v444, %v443
    %v523 = vpack.c.b16 %v446, %v445
    %v524 = vpack.c.b16 %v448, %v447
    %v525 = vpack.c.b16 %v450, %v449
    %v526 = vpack.c.b16 %v452, %v451
    %v527 = vpack.c.b16 %v454, %v453
    %v528 = vpack.c.b16 %v456, %v455
    %v529 = vpack.c.b16 %v458, %v457
    %v530 = vpack.c.b16 %v460, %v459
    %v531 = vpack.c.b16 %v462, %v461
    %v532 = vpack.c.b16 %v464, %v463
    %v533 = vpack.c.b16 %v466, %v465
    %v534 = vpack.c.b16 %v468, %v467
    %v535 = vpack.c.b16 %v470, %v469
    %v536 = vpack.c.b16 %v472, %v471
    %601 = vmatprep.subr.bf16.mxu0 0
    %602 = vmatpush1.bf16.msra.mxu0 %v473
    %603 = vmatprep.subr.bf16.mxu0 0
    %604 = vmatpush1.bf16.msra.mxu0 %v474
    %605 = vmatprep.subr.bf16.mxu0 0
    %606 = vmatpush1.bf16.msra.mxu0 %v475
    %607 = vmatprep.subr.bf16.mxu0 0
    %608 = vmatpush1.bf16.msra.mxu0 %v476
    %609 = vmatprep.subr.bf16.mxu0 0
    %610 = vmatpush1.bf16.msra.mxu0 %v477
    %611 = vmatprep.subr.bf16.mxu0 0
    %612 = vmatpush1.bf16.msra.mxu0 %v478
    %613 = vmatprep.subr.bf16.mxu0 0
    %614 = vmatpush1.bf16.msra.mxu0 %v479
    %615 = vmatprep.subr.bf16.mxu0 0
    %616 = vmatpush1.bf16.msra.mxu0 %v480
    %617 = vmatprep.subr.bf16.mxu0 0
    %618 = vmatpush1.bf16.msra.mxu0 %v481
    %619 = vmatprep.subr.bf16.mxu0 0
    %620 = vmatpush1.bf16.msra.mxu0 %v482
    %621 = vmatprep.subr.bf16.mxu0 0
    %622 = vmatpush1.bf16.msra.mxu0 %v483
    %623 = vmatprep.subr.bf16.mxu0 0
    %624 = vmatpush1.bf16.msra.mxu0 %v484
    %625 = vmatprep.subr.bf16.mxu0 0
    %626 = vmatpush1.bf16.msra.mxu0 %v485
    %627 = vmatprep.subr.bf16.mxu0 0
    %628 = vmatpush1.bf16.msra.mxu0 %v486
    %629 = vmatprep.subr.bf16.mxu0 0
    %630 = vmatpush1.bf16.msra.mxu0 %v487
    %631 = vmatprep.subr.bf16.mxu0 0
    %632 = vmatpush1.bf16.msra.mxu0 %v488
    %633 = vmatprep.mubr.bf16.mxu0 %v75
    %634 = vmatmul.mubr.bf16.gmra.mrb[0].mxu0 %v74
    %v635 = vpop.f32.mrb[0].mxu0
    %v636 = vadd.f32 %v215, %v635
    %v637 = vpop.f32.mrb[0].mxu0
    %v638 = vpop.f32.mrb[0].mxu0
    %v639 = vpop.f32.mrb[0].mxu0
    %640 = vdwg.mxu0
    %641 = vmatprep.subr.bf16.mxu0 0
    %642 = vmatpush1.bf16.msra.mxu0 %v489
    %643 = vmatprep.subr.bf16.mxu0 0
    %644 = vmatpush1.bf16.msra.mxu0 %v490
    %645 = vmatprep.subr.bf16.mxu0 0
    %646 = vmatpush1.bf16.msra.mxu0 %v491
    %647 = vmatprep.subr.bf16.mxu0 0
    %648 = vmatpush1.bf16.msra.mxu0 %v492
    %649 = vmatprep.subr.bf16.mxu0 0
    %650 = vmatpush1.bf16.msra.mxu0 %v493
    %651 = vmatprep.subr.bf16.mxu0 0
    %652 = vmatpush1.bf16.msra.mxu0 %v494
    %653 = vmatprep.subr.bf16.mxu0 0
    %654 = vmatpush1.bf16.msra.mxu0 %v495
    %655 = vmatprep.subr.bf16.mxu0 0
    %656 = vmatpush1.bf16.msra.mxu0 %v496
    %657 = vmatprep.subr.bf16.mxu0 0
    %658 = vmatpush1.bf16.msra.mxu0 %v497
    %659 = vmatprep.subr.bf16.mxu0 0
    %660 = vmatpush1.bf16.msra.mxu0 %v498
    %661 = vmatprep.subr.bf16.mxu0 0
    %662 = vmatpush1.bf16.msra.mxu0 %v499
    %663 = vmatprep.subr.bf16.mxu0 0
    %664 = vmatpush1.bf16.msra.mxu0 %v500
    %665 = vmatprep.subr.bf16.mxu0 0
    %666 = vmatpush1.bf16.msra.mxu0 %v501
    %667 = vmatprep.subr.bf16.mxu0 0
    %668 = vmatpush1.bf16.msra.mxu0 %v502
    %669 = vmatprep.subr.bf16.mxu0 0
    %670 = vmatpush1.bf16.msra.mxu0 %v503
    %671 = vmatprep.subr.bf16.mxu0 0
    %672 = vmatpush1.bf16.msra.mxu0 %v504
    %673 = vmatprep.mubr.bf16.mxu0 %v77
    %674 = vmatmul.mubr.bf16.gmra.mrb[0].mxu0 %v76
    %v675 = vpop.f32.mrb[0].mxu0
    %v676 = vadd.f32 %v636, %v675
    %v677 = vpop.f32.mrb[0].mxu0
    %v678 = vpop.f32.mrb[0].mxu0
    %v679 = vpop.f32.mrb[0].mxu0
    %680 = vdwg.mxu0
    %681 = vmatprep.subr.bf16.mxu0 0
    %682 = vmatpush1.bf16.msra.mxu0 %v505
    %683 = vmatprep.subr.bf16.mxu0 0
    %684 = vmatpush1.bf16.msra.mxu0 %v506
    %685 = vmatprep.subr.bf16.mxu0 0
    %686 = vmatpush1.bf16.msra.mxu0 %v507
    %687 = vmatprep.subr.bf16.mxu0 0
    %688 = vmatpush1.bf16.msra.mxu0 %v508
    %689 = vmatprep.subr.bf16.mxu0 0
    %690 = vmatpush1.bf16.msra.mxu0 %v509
    %691 = vmatprep.subr.bf16.mxu0 0
    %692 = vmatpush1.bf16.msra.mxu0 %v510
    %693 = vmatprep.subr.bf16.mxu0 0
    %694 = vmatpush1.bf16.msra.mxu0 %v511
    %695 = vmatprep.subr.bf16.mxu0 0
    %696 = vmatpush1.bf16.msra.mxu0 %v512
    %697 = vmatprep.subr.bf16.mxu0 0
    %698 = vmatpush1.bf16.msra.mxu0 %v513
    %699 = vmatprep.subr.bf16.mxu0 0
    %700 = vmatpush1.bf16.msra.mxu0 %v514
    %701 = vmatprep.subr.bf16.mxu0 0
    %702 = vmatpush1.bf16.msra.mxu0 %v515
    %703 = vmatprep.subr.bf16.mxu0 0
    %704 = vmatpush1.bf16.msra.mxu0 %v516
    %705 = vmatprep.subr.bf16.mxu0 0
    %706 = vmatpush1.bf16.msra.mxu0 %v517
    %707 = vmatprep.subr.bf16.mxu0 0
    %708 = vmatpush1.bf16.msra.mxu0 %v518
    %709 = vmatprep.subr.bf16.mxu0 0
    %710 = vmatpush1.bf16.msra.mxu0 %v519
    %711 = vmatprep.subr.bf16.mxu0 0
    %712 = vmatpush1.bf16.msra.mxu0 %v520
    %713 = vmatprep.mubr.bf16.mxu0 %v79
    %714 = vmatmul.mubr.bf16.gmra.mrb[0].mxu0 %v78
    %v715 = vpop.f32.mrb[0].mxu0
    %v716 = vadd.f32 %v676, %v715
    %v717 = vpop.f32.mrb[0].mxu0
    %v718 = vpop.f32.mrb[0].mxu0
    %v719 = vpop.f32.mrb[0].mxu0
    %720 = vdwg.mxu0
    %721 = vmatprep.subr.bf16.mxu0 0
    %722 = vmatpush1.bf16.msra.mxu0 %v521
    %723 = vmatprep.subr.bf16.mxu0 0
    %724 = vmatpush1.bf16.msra.mxu0 %v522
    %725 = vmatprep.subr.bf16.mxu0 0
    %726 = vmatpush1.bf16.msra.mxu0 %v523
    %727 = vmatprep.subr.bf16.mxu0 0
    %728 = vmatpush1.bf16.msra.mxu0 %v524
    %729 = vmatprep.subr.bf16.mxu0 0
    %730 = vmatpush1.bf16.msra.mxu0 %v525
    %731 = vmatprep.subr.bf16.mxu0 0
    %732 = vmatpush1.bf16.msra.mxu0 %v526
    %733 = vmatprep.subr.bf16.mxu0 0
    %734 = vmatpush1.bf16.msra.mxu0 %v527
    %735 = vmatprep.subr.bf16.mxu0 0
    %736 = vmatpush1.bf16.msra.mxu0 %v528
    %737 = vmatprep.subr.bf16.mxu0 0
    %738 = vmatpush1.bf16.msra.mxu0 %v529
    %739 = vmatprep.subr.bf16.mxu0 0
    %740 = vmatpush1.bf16.msra.mxu0 %v530
    %741 = vmatprep.subr.bf16.mxu0 0
    %742 = vmatpush1.bf16.msra.mxu0 %v531
    %743 = vmatprep.subr.bf16.mxu0 0
    %744 = vmatpush1.bf16.msra.mxu0 %v532
    %745 = vmatprep.subr.bf16.mxu0 0
    %746 = vmatpush1.bf16.msra.mxu0 %v533
    %747 = vmatprep.subr.bf16.mxu0 0
    %748 = vmatpush1.bf16.msra.mxu0 %v534
    %749 = vmatprep.subr.bf16.mxu0 0
    %750 = vmatpush1.bf16.msra.mxu0 %v535
    %751 = vmatprep.subr.bf16.mxu0 0
    %752 = vmatpush1.bf16.msra.mxu0 %v536
    %753 = vmatprep.mubr.bf16.mxu0 %v81
    %754 = vmatmul.mubr.bf16.gmra.mrb[0].mxu0 %v80
    %v755 = vpop.f32.mrb[0].mxu0
    %v756 = vadd.f32 %v716, %v755
    %v757 = vpop.f32.mrb[0].mxu0
    %v758 = vpop.f32.mrb[0].mxu0
    %v759 = vpop.f32.mrb[0].mxu0
    %760 = vdwg.mxu0
    %v761 = vmax.f32 %v756, 0.0
    %v762 = vpack.c.bf16 %v761, %v761
    %v763 = vld [vmem:[%s3] sm:$0xf]
    %v764 = vld [vmem:[%s3 + $0x4] sm:$0xf]
    %v765 = vld [vmem:[%s3 + $0x8] sm:$0xf]
    %v766 = vld [vmem:[%s3 + $0xc] sm:$0xf]
    %v767 = vld [vmem:[%s3 + $0x10] sm:$0xf]
    %v768 = vld [vmem:[%s3 + $0x14] sm:$0xf]
    %v769 = vld [vmem:[%s3 + $0x18] sm:$0xf]
    %v770 = vld [vmem:[%s3 + $0x1c] sm:$0xf]
    %v771 = vld [vmem:[%s4] sm:$0x1]
    %v773 = vlaneseq
    %v774 = vshrl.u32 %v773, 7
    %v775 = vsub.s32 0, %v774
    %v776 = vrot.slane %v771, %v775
    %v786 = vunpack.c.l.b16 %v763
    %v787 = vunpack.c.l.b16 %v764
    %v788 = vunpack.c.l.b16 %v765
    %v789 = vunpack.c.l.b16 %v766
    %v790 = vunpack.c.l.b16 %v767
    %v791 = vunpack.c.l.b16 %v768
    %v792 = vunpack.c.l.b16 %v769
    %v793 = vunpack.c.l.b16 %v770
    %v794 = vpack.c.b16 %v787, %v786
    %v795 = vpack.c.b16 %v789, %v788
    %v796 = vpack.c.b16 %v791, %v790
    %v797 = vpack.c.b16 %v793, %v792
    %vm802 = vcmask 523264
    %v804 = vsel %vm802, %v762, 0
    %806 = vmatprep.subr.bf16.mxu0 0
    %807 = vmatpush1.bf16.msra.mxu0 %v794
    %808 = vmatprep.subr.bf16.mxu0 0
    %809 = vmatpush1.bf16.msra.mxu0 %v795
    %810 = vmatprep.subr.bf16.mxu0 0
    %811 = vmatpush1.bf16.msra.mxu0 %v796
    %812 = vmatprep.subr.bf16.mxu0 0
    %813 = vmatpush1.bf16.msra.mxu0 %v797
    %814 = vmatprep.subr.bf16.mxu0 0
    %815 = vmatpush1.bf16.msra.mxu0 0
    %816 = vmatprep.subr.bf16.mxu0 0
    %817 = vmatpush1.bf16.msra.mxu0 0
    %818 = vmatprep.subr.bf16.mxu0 0
    %819 = vmatpush1.bf16.msra.mxu0 0
    %820 = vmatprep.subr.bf16.mxu0 0
    %821 = vmatpush1.bf16.msra.mxu0 0
    %822 = vmatprep.subr.bf16.mxu0 0
    %823 = vmatpush1.bf16.msra.mxu0 0
    %824 = vmatprep.subr.bf16.mxu0 0
    %825 = vmatpush1.bf16.msra.mxu0 0
    %826 = vmatprep.subr.bf16.mxu0 0
    %827 = vmatpush1.bf16.msra.mxu0 0
    %828 = vmatprep.subr.bf16.mxu0 0
    %829 = vmatpush1.bf16.msra.mxu0 0
    %830 = vmatprep.subr.bf16.mxu0 0
    %831 = vmatpush1.bf16.msra.mxu0 0
    %832 = vmatprep.subr.bf16.mxu0 0
    %833 = vmatpush1.bf16.msra.mxu0 0
    %834 = vmatprep.subr.bf16.mxu0 0
    %835 = vmatpush1.bf16.msra.mxu0 0
    %836 = vmatprep.subr.bf16.mxu0 0
    %837 = vmatpush1.bf16.msra.mxu0 0
    %838 = vmatprep.mubr.bf16.mxu0 0
    %839 = vmatmul.mubr.bf16.gmra.mrb[0].mxu0 %v804
    %v840 = vpop.f32.mrb[0].mxu0
    %v841 = vadd.f32 %v776, %v840
    %v842 = vpop.f32.mrb[0].mxu0
    %v843 = vpop.f32.mrb[0].mxu0
    %v844 = vpop.f32.mrb[0].mxu0
    %845 = vdwg.mxu0
    %v846 = vmax.f32 %v841, 0.0
    %v847 = vpack.c.bf16 %v846, %v846
    %v848 = vld [vmem:[%s5] sm:$0xf]
    %v849 = vld [vmem:[%s5 + $0x4] sm:$0xf]
    %v850 = vld [vmem:[%s5 + $0x8] sm:$0xf]
    %v851 = vld [vmem:[%s5 + $0xc] sm:$0xf]
    %v852 = vld [vmem:[%s5 + $0x10] sm:$0xf]
    %v853 = vld [vmem:[%s5 + $0x14] sm:$0xf]
    %v854 = vld [vmem:[%s5 + $0x18] sm:$0xf]
    %v855 = vld [vmem:[%s5 + $0x1c] sm:$0xf]
    %v856 = vld [vmem:[%s6] sm:$0x1]
    %v858 = vlaneseq
    %v859 = vshrl.u32 %v858, 7
    %v860 = vsub.s32 0, %v859
    %v861 = vrot.slane %v856, %v860
    %v871 = vunpack.c.l.b16 %v848
    %v872 = vunpack.c.l.b16 %v849
    %v873 = vunpack.c.l.b16 %v850
    %v874 = vunpack.c.l.b16 %v851
    %v875 = vunpack.c.l.b16 %v852
    %v876 = vunpack.c.l.b16 %v853
    %v877 = vunpack.c.l.b16 %v854
    %v878 = vunpack.c.l.b16 %v855
    %v879 = vpack.c.b16 %v872, %v871
    %v880 = vpack.c.b16 %v874, %v873
    %v881 = vpack.c.b16 %v876, %v875
    %v882 = vpack.c.b16 %v878, %v877
    %v888 = vsel %vm802, %v847, 0
    %890 = vmatprep.subr.bf16.mxu0 0
    %891 = vmatpush1.bf16.msra.mxu0 %v879
    %892 = vmatprep.subr.bf16.mxu0 0
    %893 = vmatpush1.bf16.msra.mxu0 %v880
    %894 = vmatprep.subr.bf16.mxu0 0
    %895 = vmatpush1.bf16.msra.mxu0 %v881
    %896 = vmatprep.subr.bf16.mxu0 0
    %897 = vmatpush1.bf16.msra.mxu0 %v882
    %898 = vmatprep.subr.bf16.mxu0 0
    %899 = vmatpush1.bf16.msra.mxu0 0
    %900 = vmatprep.subr.bf16.mxu0 0
    %901 = vmatpush1.bf16.msra.mxu0 0
    %902 = vmatprep.subr.bf16.mxu0 0
    %903 = vmatpush1.bf16.msra.mxu0 0
    %904 = vmatprep.subr.bf16.mxu0 0
    %905 = vmatpush1.bf16.msra.mxu0 0
    %906 = vmatprep.subr.bf16.mxu0 0
    %907 = vmatpush1.bf16.msra.mxu0 0
    %908 = vmatprep.subr.bf16.mxu0 0
    %909 = vmatpush1.bf16.msra.mxu0 0
    %910 = vmatprep.subr.bf16.mxu0 0
    %911 = vmatpush1.bf16.msra.mxu0 0
    %912 = vmatprep.subr.bf16.mxu0 0
    %913 = vmatpush1.bf16.msra.mxu0 0
    %914 = vmatprep.subr.bf16.mxu0 0
    %915 = vmatpush1.bf16.msra.mxu0 0
    %916 = vmatprep.subr.bf16.mxu0 0
    %917 = vmatpush1.bf16.msra.mxu0 0
    %918 = vmatprep.subr.bf16.mxu0 0
    %919 = vmatpush1.bf16.msra.mxu0 0
    %920 = vmatprep.subr.bf16.mxu0 0
    %921 = vmatpush1.bf16.msra.mxu0 0
    %922 = vmatprep.mubr.bf16.mxu0 0
    %923 = vmatmul.mubr.bf16.gmra.mrb[0].mxu0 %v888
    %v924 = vpop.f32.mrb[0].mxu0
    %v925 = vadd.f32 %v861, %v924
    %v926 = vpop.f32.mrb[0].mxu0
    %v927 = vpop.f32.mrb[0].mxu0
    %v928 = vpop.f32.mrb[0].mxu0
    %929 = vdwg.mxu0
    %930 = vst [vmem:[#allocation2] sm:$0x3] %v925
    // Predicated region
    $region30: #{tpu_custom_call.1} parent=1 // pred_check
      _
    $region31: #{tpu_custom_call.1} parent=1 // pred_check_branch
      %932 = sbr.rel (0) target = $region33
    $region32: #{tpu_custom_call.1} parent=1 // pred_region
      %s934 = ssub.s32 32, 32
      %935 = vsyncadd [#allocation3], %s934
      %s937 = sshll.u32 [#allocation2], 4
      %s938 = int_to_ptr.vmem [resolvable:$true] %s937
      %940 = dma.vmem_to_hbm [thread:$0]  %s938, 32, %s7, [#allocation3]
    $region33: #{tpu_custom_call.1} parent=1 // pred_fallthru
      _
    // Predicated region
    $region34: #{tpu_custom_call.1} parent=1 // pred_check
      _
    $region35: #{tpu_custom_call.1} parent=1 // pred_check_branch
      %942 = sbr.rel (0) target = $region37
    $region36: #{tpu_custom_call.1} parent=1 // pred_region
      %943 = dma.done [#allocation3], 32
    $region37: #{tpu_custom_call.1} parent=1 // pred_fallthru
      _
    %944 = vsyncpa [#allocation3], 1

</llo_original>
